<compile_context>
chip_gen: v7x
topology: tpu7x:2x2x1
jax: 0.10.0
libtpu: 0.0.40
codegen_flags: <defaults>
</compile_context>

<pallas_src>
import functools

import jax
import jax.numpy as jnp
from jax import lax
from jax.experimental import pallas as pl
from jax.experimental.pallas import tpu as pltpu

_NORM_EPS = 1e-12   # torch.nn.functional.normalize default eps
_SSQ_ROWS = 8       # f32 sublane count: per-tile partial ssq padded to (8, feat)


def _dense(h, w_ref, b_ref, relu):
    # bf16 operands into the MXU (native rate on v5e/v6e/v7x), f32 accumulation,
    # bias + ReLU on the f32 result in the VPU.
    acc = jnp.dot(h.astype(jnp.bfloat16), w_ref[...],
                  preferred_element_type=jnp.float32) + b_ref[...]
    return jnp.maximum(acc, 0.0) if relu else acc


def _mlp_kernel(inline_normalize,
                x_ref,
                w1_ref, b1_ref, w2_ref, b2_ref, w3_ref, b3_ref,
                w4_ref, b4_ref, w5_ref, b5_ref,
                *out_refs):
    """One batch tile: 5 chained (tb x 128 x 128) matmuls.

    inline_normalize=True  (single-tile grid): also applies F.normalize(dim=0).
    inline_normalize=False: writes the un-normalized tile plus its per-column
                            partial sum-of-squares; pass 2 finishes the job.
    """
    h = x_ref[...]
    h = _dense(h, w1_ref, b1_ref, relu=True)     # layer1
    h = _dense(h, w2_ref, b2_ref, relu=True)     # layer2
    h = _dense(h, w3_ref, b3_ref, relu=True)     # layer3
    h = _dense(h, w4_ref, b4_ref, relu=True)     # head[0] + head[1]
    y = _dense(h, w5_ref, b5_ref, relu=False)    # head[2]   (f32)

    if inline_normalize:
        (y_ref,) = out_refs
        ssq = jnp.sum(y * y, axis=0, keepdims=True)                      # (1, feat)
        # 1 / max(sqrt(ssq), eps) == rsqrt(max(ssq, eps^2)); EUP rsqrt.
        inv = lax.rsqrt(jnp.maximum(ssq, _NORM_EPS * _NORM_EPS))
        y_ref[...] = (y * inv).astype(y_ref.dtype)
    else:
        y_ref, ssq_ref = out_refs
        y_ref[...] = y.astype(y_ref.dtype)                               # lane-dense store
        partial = jnp.sum(y * y, axis=0, keepdims=True)                  # (1, feat)
        # Pad the (1, feat) partial into an (8, feat) block (row 0 = data) so the
        # partials output keeps (8,128)-aligned blocks; pass 2 just sums all rows.
        rows = lax.broadcasted_iota(jnp.int32, ssq_ref.shape, 0)
        ssq_ref[...] = jnp.where(rows == 0,
                                 jnp.broadcast_to(partial, ssq_ref.shape), 0.0)


def _normalize_kernel(y_ref, ssq_ref, out_ref):
    """Pass 2: reduce per-tile partial sum-of-squares, rescale one output tile."""
    total = jnp.sum(ssq_ref[...], axis=0, keepdims=True)                 # (1, feat)
    inv = lax.rsqrt(jnp.maximum(total, _NORM_EPS * _NORM_EPS))
    out_ref[...] = (y_ref[...].astype(jnp.float32) * inv).astype(out_ref.dtype)


def _pick_batch_tile(batch, widths):
    # Largest batch tile (multiple of 8 f32 sublanes) that divides the batch and
    # keeps live activations + double-buffered x/y tiles well under the scoped
    # VMEM defaults (16 MiB v5e / 32 MiB v6e & v7x).  Fewer, larger grid steps
    # win: per-step overhead (~0.35 us) dominates at these shapes.
    budget = 8 * 1024 * 1024
    per_row = 4 * (2 * widths[0] + 2 * widths[-1] + max(widths))
    for tb in (4096, 2048, 1024, 512, 256, 128, 64, 32, 16, 8):
        if batch % tb == 0 and tb * per_row <= budget:
            return tb
    return batch  # tiny / odd batch: single tile (block == full array is legal)


def clcp_forward(x, params, *, tb=None):
    """x: (B, d_in); params: 5 x (w [in, out], b [1, out]) — weights pre-transposed."""
    (w1, b1), (w2, b2), (w3, b3), (w4, b4), (w5, b5) = params
    B, d_in = x.shape
    h1, h2 = w1.shape[1], w2.shape[1]
    d_out, feat = w3.shape[1], w5.shape[1]

    # bf16 weights in HBM (halves weight DMA + weight VMEM), f32 biases.
    ws = [w.astype(jnp.bfloat16) for w in (w1, w2, w3, w4, w5)]
    bs = [b.reshape(1, -1).astype(jnp.float32) for b in (b1, b2, b3, b4, b5)]

    if tb is None:
        tb = _pick_batch_tile(B, (d_in, h1, h2, d_out, d_out, feat))
    assert B % tb == 0, "batch must be divisible by the batch tile"
    n_tiles = B // tb

    const = lambda i: (0, 0)   # weights / biases (and ssq in pass 2) stay resident
    row = lambda i: (i, 0)     # streamed / pipelined batch tiles

    w_specs, flat_params = [], []
    for w, b in zip(ws, bs):
        w_specs += [pl.BlockSpec(w.shape, const), pl.BlockSpec(b.shape, const)]
        flat_params += [w, b]

    x_spec = pl.BlockSpec((tb, d_in), row)
    y_spec = pl.BlockSpec((tb, feat), row)     # lane-dense (feat multiple of 128)
    parallel = pltpu.CompilerParams(dimension_semantics=("parallel",))

    if n_tiles == 1:
        # Single tile: fully fused, normalization done in-kernel, grid=(1,).
        return pl.pallas_call(
            functools.partial(_mlp_kernel, True),
            out_shape=jax.ShapeDtypeStruct((B, feat), x.dtype),
            grid=(1,),
            in_specs=[x_spec] + w_specs,
            out_specs=y_spec,
            compiler_params=parallel,
        )(x, *flat_params)

    # Pass 1: independent batch tiles -> un-normalized output + partial ssq.
    y, ssq = pl.pallas_call(
        functools.partial(_mlp_kernel, False),
        out_shape=(jax.ShapeDtypeStruct((B, feat), x.dtype),
                   jax.ShapeDtypeStruct((n_tiles * _SSQ_ROWS, feat), jnp.float32)),
        grid=(n_tiles,),
        in_specs=[x_spec] + w_specs,
        out_specs=(y_spec, pl.BlockSpec((_SSQ_ROWS, feat), row)),
        compiler_params=parallel,
    )(x, *flat_params)

    # Pass 2: reduce partials + rescale, in place over the pass-1 output buffer.
    return pl.pallas_call(
        _normalize_kernel,
        out_shape=jax.ShapeDtypeStruct((B, feat), x.dtype),
        grid=(n_tiles,),
        in_specs=[y_spec,
                  pl.BlockSpec((n_tiles * _SSQ_ROWS, feat), const)],
        out_specs=y_spec,
        input_output_aliases={0: 0},
        compiler_params=parallel,
    )(y, ssq)


if __name__ == "__main__":
    # Shapes consistent with the module defaults:
    #   model_in_dim=128, model_n_hidden_1=128, model_n_hidden_2=128,
    #   model_out_dim=128, feat_dim=128, batch=512.
    B, D_IN, H1, H2, D_OUT, FEAT = 512, 128, 128, 128, 128, 128

    key = jax.random.PRNGKey(0)
    keys = jax.random.split(key, 11)
    x = jax.random.normal(keys[0], (B, D_IN), dtype=jnp.float32)

    def make_linear(kw, kb, fan_in, fan_out):
        # PyTorch nn.Linear stores weight as [out, in]; we keep the transposed
        # [in, out] layout so the kernel computes x @ W + b directly.
        w = jax.random.normal(kw, (fan_in, fan_out), dtype=jnp.float32) * 0.1
        b = jax.random.normal(kb, (1, fan_out), dtype=jnp.float32) * 0.1
        return w, b

    dims = [(D_IN, H1), (H1, H2), (H2, D_OUT), (D_OUT, D_OUT), (D_OUT, FEAT)]
    params = [make_linear(keys[1 + 2 * i], keys[2 + 2 * i], fi, fo)
              for i, (fi, fo) in enumerate(dims)]

    fwd_fused = jax.jit(clcp_forward)                               # tb auto -> 512, grid=(1,)
    fwd_tiled = jax.jit(functools.partial(clcp_forward, tb=128))    # two-pass, 4 parallel tiles

    out_fused = jax.block_until_ready(fwd_fused(x, params))
    out_tiled = jax.block_until_ready(fwd_tiled(x, params))

    # References: exact f32 module math, plus a bf16-operand-matched version
    # (kernel feeds the MXU bf16 operands with f32 accumulation).
    def ref_forward(xv, bf16_operands):
        h = xv
        for (w, b), relu in zip(params, (True, True, True, True, False)):
            if bf16_operands:
                h = jnp.dot(h.astype(jnp.bfloat16), w.astype(jnp.bfloat16),
                            preferred_element_type=jnp.float32) + b
            else:
                h = h @ w + b
            if relu:
                h = jnp.maximum(h, 0.0)
        norm = jnp.sqrt(jnp.sum(h * h, axis=0, keepdims=True))
        return h / jnp.maximum(norm, _NORM_EPS)

    ref_bf16 = ref_forward(x, True)
    ref_f32 = ref_forward(x, False)

    for name, out in (("fused", out_fused), ("tiled", out_tiled)):
        assert out.shape == (B, FEAT)
        # Tight check vs. precision-matched (bf16-operand) reference.
        assert jnp.allclose(out, ref_bf16, atol=1e-3, rtol=1e-3), (
            name, float(jnp.max(jnp.abs(out - ref_bf16))))
        # Loose check vs. exact f32 module math (tolerance reflects bf16 MXU operands).
        assert jnp.allclose(out, ref_f32, atol=5e-3, rtol=5e-2), (
            name, float(jnp.max(jnp.abs(out - ref_f32))))

    print("KERNEL_OK")
</pallas_src>

<mosaic_0001>
module attributes {stable_mosaic.version = 11 : i64} {
  func.func @_mlp_kernel(%arg0: i32, %arg1: memref<512x128xf32, #tpu.memory_space<vmem>>, %arg2: memref<128x128xbf16, #tpu.memory_space<vmem>>, %arg3: memref<1x128xf32, #tpu.memory_space<vmem>>, %arg4: memref<128x128xbf16, #tpu.memory_space<vmem>>, %arg5: memref<1x128xf32, #tpu.memory_space<vmem>>, %arg6: memref<128x128xbf16, #tpu.memory_space<vmem>>, %arg7: memref<1x128xf32, #tpu.memory_space<vmem>>, %arg8: memref<128x128xbf16, #tpu.memory_space<vmem>>, %arg9: memref<1x128xf32, #tpu.memory_space<vmem>>, %arg10: memref<128x128xbf16, #tpu.memory_space<vmem>>, %arg11: memref<1x128xf32, #tpu.memory_space<vmem>>, %arg12: memref<512x128xf32, #tpu.memory_space<vmem>>) attributes {dimension_semantics = [#tpu.dimension_semantics<parallel>], iteration_bounds = array<i64: 1>, scalar_prefetch = 0 : i64, scratch_operands = 0 : i64, tpu.core_type = #tpu.core_type<tc>, window_params = [{transform_indices = @transform_0, window_bounds = array<i64: 512, 128>}, {pipeline_mode = #tpu.pipeline_mode<synchronous>, transform_indices = @transform_1, window_bounds = array<i64: 128, 128>}, {pipeline_mode = #tpu.pipeline_mode<synchronous>, transform_indices = @transform_2, window_bounds = array<i64: 1, 128>}, {pipeline_mode = #tpu.pipeline_mode<synchronous>, transform_indices = @transform_3, window_bounds = array<i64: 128, 128>}, {pipeline_mode = #tpu.pipeline_mode<synchronous>, transform_indices = @transform_4, window_bounds = array<i64: 1, 128>}, {pipeline_mode = #tpu.pipeline_mode<synchronous>, transform_indices = @transform_5, window_bounds = array<i64: 128, 128>}, {pipeline_mode = #tpu.pipeline_mode<synchronous>, transform_indices = @transform_6, window_bounds = array<i64: 1, 128>}, {pipeline_mode = #tpu.pipeline_mode<synchronous>, transform_indices = @transform_7, window_bounds = array<i64: 128, 128>}, {pipeline_mode = #tpu.pipeline_mode<synchronous>, transform_indices = @transform_8, window_bounds = array<i64: 1, 128>}, {pipeline_mode = #tpu.pipeline_mode<synchronous>, transform_indices = @transform_9, window_bounds = array<i64: 128, 128>}, {pipeline_mode = #tpu.pipeline_mode<synchronous>, transform_indices = @transform_10, window_bounds = array<i64: 1, 128>}, {transform_indices = @transform_11, window_bounds = array<i64: 512, 128>}]} {
    %c0 = arith.constant 0 : index
    %c0_0 = arith.constant 0 : index
    %0 = vector.load %arg1[%c0, %c0_0] : memref<512x128xf32, #tpu.memory_space<vmem>>, vector<512x128xf32>
    %1 = arith.truncf %0 : vector<512x128xf32> to vector<512x128xbf16>
    %c0_1 = arith.constant 0 : index
    %c0_2 = arith.constant 0 : index
    %2 = vector.load %arg2[%c0_1, %c0_2] : memref<128x128xbf16, #tpu.memory_space<vmem>>, vector<128x128xbf16>
    %cst = arith.constant dense<0.000000e+00> : vector<512x128xf32>
    %3 = tpu.matmul %1, %2, %cst {dimension_numbers = #tpu.dot_dimension_numbers<[1], [0], [0], [1], [0, 0, 1, 1], [], []>} : vector<512x128xbf16>, vector<128x128xbf16>, vector<512x128xf32> -> vector<512x128xf32>
    %c0_3 = arith.constant 0 : index
    %c0_4 = arith.constant 0 : index
    %4 = vector.load %arg3[%c0_3, %c0_4] : memref<1x128xf32, #tpu.memory_space<vmem>>, vector<1x128xf32>
    %5 = vector.broadcast %4 : vector<1x128xf32> to vector<512x128xf32>
    %6 = arith.addf %3, %5 : vector<512x128xf32>
    %cst_5 = arith.constant 0.000000e+00 : f32
    %7 = vector.broadcast %cst_5 : f32 to vector<512x128xf32>
    %8 = arith.maximumf %6, %7 : vector<512x128xf32>
    %9 = arith.truncf %8 : vector<512x128xf32> to vector<512x128xbf16>
    %c0_6 = arith.constant 0 : index
    %c0_7 = arith.constant 0 : index
    %10 = vector.load %arg4[%c0_6, %c0_7] : memref<128x128xbf16, #tpu.memory_space<vmem>>, vector<128x128xbf16>
    %cst_8 = arith.constant dense<0.000000e+00> : vector<512x128xf32>
    %11 = tpu.matmul %9, %10, %cst_8 {dimension_numbers = #tpu.dot_dimension_numbers<[1], [0], [0], [1], [0, 0, 1, 1], [], []>} : vector<512x128xbf16>, vector<128x128xbf16>, vector<512x128xf32> -> vector<512x128xf32>
    %c0_9 = arith.constant 0 : index
    %c0_10 = arith.constant 0 : index
    %12 = vector.load %arg5[%c0_9, %c0_10] : memref<1x128xf32, #tpu.memory_space<vmem>>, vector<1x128xf32>
    %13 = vector.broadcast %12 : vector<1x128xf32> to vector<512x128xf32>
    %14 = arith.addf %11, %13 : vector<512x128xf32>
    %cst_11 = arith.constant 0.000000e+00 : f32
    %15 = vector.broadcast %cst_11 : f32 to vector<512x128xf32>
    %16 = arith.maximumf %14, %15 : vector<512x128xf32>
    %17 = arith.truncf %16 : vector<512x128xf32> to vector<512x128xbf16>
    %c0_12 = arith.constant 0 : index
    %c0_13 = arith.constant 0 : index
    %18 = vector.load %arg6[%c0_12, %c0_13] : memref<128x128xbf16, #tpu.memory_space<vmem>>, vector<128x128xbf16>
    %cst_14 = arith.constant dense<0.000000e+00> : vector<512x128xf32>
    %19 = tpu.matmul %17, %18, %cst_14 {dimension_numbers = #tpu.dot_dimension_numbers<[1], [0], [0], [1], [0, 0, 1, 1], [], []>} : vector<512x128xbf16>, vector<128x128xbf16>, vector<512x128xf32> -> vector<512x128xf32>
    %c0_15 = arith.constant 0 : index
    %c0_16 = arith.constant 0 : index
    %20 = vector.load %arg7[%c0_15, %c0_16] : memref<1x128xf32, #tpu.memory_space<vmem>>, vector<1x128xf32>
    %21 = vector.broadcast %20 : vector<1x128xf32> to vector<512x128xf32>
    %22 = arith.addf %19, %21 : vector<512x128xf32>
    %cst_17 = arith.constant 0.000000e+00 : f32
    %23 = vector.broadcast %cst_17 : f32 to vector<512x128xf32>
    %24 = arith.maximumf %22, %23 : vector<512x128xf32>
    %25 = arith.truncf %24 : vector<512x128xf32> to vector<512x128xbf16>
    %c0_18 = arith.constant 0 : index
    %c0_19 = arith.constant 0 : index
    %26 = vector.load %arg8[%c0_18, %c0_19] : memref<128x128xbf16, #tpu.memory_space<vmem>>, vector<128x128xbf16>
    %cst_20 = arith.constant dense<0.000000e+00> : vector<512x128xf32>
    %27 = tpu.matmul %25, %26, %cst_20 {dimension_numbers = #tpu.dot_dimension_numbers<[1], [0], [0], [1], [0, 0, 1, 1], [], []>} : vector<512x128xbf16>, vector<128x128xbf16>, vector<512x128xf32> -> vector<512x128xf32>
    %c0_21 = arith.constant 0 : index
    %c0_22 = arith.constant 0 : index
    %28 = vector.load %arg9[%c0_21, %c0_22] : memref<1x128xf32, #tpu.memory_space<vmem>>, vector<1x128xf32>
    %29 = vector.broadcast %28 : vector<1x128xf32> to vector<512x128xf32>
    %30 = arith.addf %27, %29 : vector<512x128xf32>
    %cst_23 = arith.constant 0.000000e+00 : f32
    %31 = vector.broadcast %cst_23 : f32 to vector<512x128xf32>
    %32 = arith.maximumf %30, %31 : vector<512x128xf32>
    %33 = arith.truncf %32 : vector<512x128xf32> to vector<512x128xbf16>
    %c0_24 = arith.constant 0 : index
    %c0_25 = arith.constant 0 : index
    %34 = vector.load %arg10[%c0_24, %c0_25] : memref<128x128xbf16, #tpu.memory_space<vmem>>, vector<128x128xbf16>
    %cst_26 = arith.constant dense<0.000000e+00> : vector<512x128xf32>
    %35 = tpu.matmul %33, %34, %cst_26 {dimension_numbers = #tpu.dot_dimension_numbers<[1], [0], [0], [1], [0, 0, 1, 1], [], []>} : vector<512x128xbf16>, vector<128x128xbf16>, vector<512x128xf32> -> vector<512x128xf32>
    %c0_27 = arith.constant 0 : index
    %c0_28 = arith.constant 0 : index
    %36 = vector.load %arg11[%c0_27, %c0_28] : memref<1x128xf32, #tpu.memory_space<vmem>>, vector<1x128xf32>
    %37 = vector.broadcast %36 : vector<1x128xf32> to vector<512x128xf32>
    %38 = arith.addf %35, %37 : vector<512x128xf32>
    %39 = arith.mulf %38, %38 : vector<512x128xf32>
    %cst_29 = arith.constant dense<0.000000e+00> : vector<128xf32>
    %40 = vector.multi_reduction <add>, %39, %cst_29 [0] : vector<512x128xf32> to vector<128xf32>
    %41 = vector.shape_cast %40 : vector<128xf32> to vector<1x128xf32>
    %cst_30 = arith.constant 1.000000e-24 : f32
    %42 = vector.broadcast %cst_30 : f32 to vector<1x128xf32>
    %43 = arith.maximumf %41, %42 : vector<1x128xf32>
    %44 = math.rsqrt %43 : vector<1x128xf32>
    %45 = vector.broadcast %44 : vector<1x128xf32> to vector<512x128xf32>
    %46 = arith.mulf %38, %45 : vector<512x128xf32>
    %c0_31 = arith.constant 0 : index
    %c0_32 = arith.constant 0 : index
    %47 = vector.load %arg12[%c0_31, %c0_32] : memref<512x128xf32, #tpu.memory_space<vmem>>, vector<512x128xf32>
    tpu.vector_store %arg12[%c0_31, %c0_32], %46 {strides = array<i32>} : memref<512x128xf32, #tpu.memory_space<vmem>>, vector<512x128xf32>,
    return
  }
  func.func @transform_0(%arg0: i32) -> (i32, i32) {
    %c0_i32 = arith.constant 0 : i32
    %c0_i32_0 = arith.constant 0 : i32
    return %arg0, %c0_i32 : i32, i32
  }
  func.func @transform_1(%arg0: i32) -> (i32, i32) {
    %c0_i32 = arith.constant 0 : i32
    %c0_i32_0 = arith.constant 0 : i32
    %c0_i32_1 = arith.constant 0 : i32
    return %c0_i32, %c0_i32_0 : i32, i32
  }
  func.func @transform_2(%arg0: i32) -> (i32, i32) {
    %c0_i32 = arith.constant 0 : i32
    %c0_i32_0 = arith.constant 0 : i32
    %c0_i32_1 = arith.constant 0 : i32
    return %c0_i32, %c0_i32_0 : i32, i32
  }
  func.func @transform_3(%arg0: i32) -> (i32, i32) {
    %c0_i32 = arith.constant 0 : i32
    %c0_i32_0 = arith.constant 0 : i32
    %c0_i32_1 = arith.constant 0 : i32
    return %c0_i32, %c0_i32_0 : i32, i32
  }
  func.func @transform_4(%arg0: i32) -> (i32, i32) {
    %c0_i32 = arith.constant 0 : i32
    %c0_i32_0 = arith.constant 0 : i32
    %c0_i32_1 = arith.constant 0 : i32
    return %c0_i32, %c0_i32_0 : i32, i32
  }
  func.func @transform_5(%arg0: i32) -> (i32, i32) {
    %c0_i32 = arith.constant 0 : i32
    %c0_i32_0 = arith.constant 0 : i32
    %c0_i32_1 = arith.constant 0 : i32
    return %c0_i32, %c0_i32_0 : i32, i32
  }
  func.func @transform_6(%arg0: i32) -> (i32, i32) {
    %c0_i32 = arith.constant 0 : i32
    %c0_i32_0 = arith.constant 0 : i32
    %c0_i32_1 = arith.constant 0 : i32
    return %c0_i32, %c0_i32_0 : i32, i32
  }
  func.func @transform_7(%arg0: i32) -> (i32, i32) {
    %c0_i32 = arith.constant 0 : i32
    %c0_i32_0 = arith.constant 0 : i32
    %c0_i32_1 = arith.constant 0 : i32
    return %c0_i32, %c0_i32_0 : i32, i32
  }
  func.func @transform_8(%arg0: i32) -> (i32, i32) {
    %c0_i32 = arith.constant 0 : i32
    %c0_i32_0 = arith.constant 0 : i32
    %c0_i32_1 = arith.constant 0 : i32
    return %c0_i32, %c0_i32_0 : i32, i32
  }
  func.func @transform_9(%arg0: i32) -> (i32, i32) {
    %c0_i32 = arith.constant 0 : i32
    %c0_i32_0 = arith.constant 0 : i32
    %c0_i32_1 = arith.constant 0 : i32
    return %c0_i32, %c0_i32_0 : i32, i32
  }
  func.func @transform_10(%arg0: i32) -> (i32, i32) {
    %c0_i32 = arith.constant 0 : i32
    %c0_i32_0 = arith.constant 0 : i32
    %c0_i32_1 = arith.constant 0 : i32
    return %c0_i32, %c0_i32_0 : i32, i32
  }
  func.func @transform_11(%arg0: i32) -> (i32, i32) {
    %c0_i32 = arith.constant 0 : i32
    %c0_i32_0 = arith.constant 0 : i32
    return %arg0, %c0_i32 : i32, i32
  }
}

</mosaic_0001>

<llo_original>
// kernel: clcp_forward.1
$region0: #{clcp_forward.1}
  #allocation0 [shape = 'u32[]', space=smem, size = 0x4, offset = 0x4, fixed_abs, tag = 'smem constant byte address 0x4 - core index']
  #allocation1 [shape = 'u32[144,128]{1,0:T(1,128)}', space=vmem, size = 0x12000, scoped, tag = 'internal scratch']
  %s0 = inlined_call_operand.vmem [shape: f32[512,128], index: 0, kind: input, shape index: {}]
  %s1 = inlined_call_operand.vmem [shape: bf16[128,128], index: 1, kind: input, shape index: {}]
  %s2 = inlined_call_operand.vmem [shape: f32[1,128], index: 2, kind: input, shape index: {}]
  %s3 = inlined_call_operand.vmem [shape: bf16[128,128], index: 3, kind: input, shape index: {}]
  %s4 = inlined_call_operand.vmem [shape: f32[1,128], index: 4, kind: input, shape index: {}]
  %s5 = inlined_call_operand.vmem [shape: bf16[128,128], index: 5, kind: input, shape index: {}]
  %s6 = inlined_call_operand.vmem [shape: f32[1,128], index: 6, kind: input, shape index: {}]
  %s7 = inlined_call_operand.vmem [shape: bf16[128,128], index: 7, kind: input, shape index: {}]
  %s8 = inlined_call_operand.vmem [shape: f32[1,128], index: 8, kind: input, shape index: {}]
  %s9 = inlined_call_operand.vmem [shape: bf16[128,128], index: 9, kind: input, shape index: {}]
  %s10 = inlined_call_operand.vmem [shape: f32[1,128], index: 10, kind: input, shape index: {}]
  %s11 = inlined_call_operand.hbm [shape: f32[512,128], index: 11, kind: output, shape index: {}]
  %s12 = sld [smem:[#allocation0]]
  $region54: #{clcp_forward.1} parent=0
    _
  %s14 = ssub.s32 1, %s12
  %s15 = scalar_select 0, %s14, %s12
  $region1: #{clcp_forward.1} parent=0
    #allocation2 [shape = 'u8[262144]{0}', space=vmem, size = 0x40000, scoped, tag = 'output window, operand 0, single buffered']
    #allocation3 [shape = 's32[1]{0}', space=sflag, size = 0x4, scoped, tag = 'scoped memory for clcp_forward.1']
    %16 = vsyncpa [#allocation3], 0
    // Predicated region
    $region2: #{clcp_forward.1} parent=1 // pred_check
      _
    $region3: #{clcp_forward.1} parent=1 // pred_check_branch
      %18 = sbr.rel (0) target = $region5
    $region4: #{clcp_forward.1} parent=1 // pred_region
      _
    $region5: #{clcp_forward.1} parent=1 // pred_fallthru
      _
    // Predicated region
    $region6: #{clcp_forward.1} parent=1 // pred_check
      _
    $region7: #{clcp_forward.1} parent=1 // pred_check_branch
      %20 = sbr.rel (0) target = $region9
    $region8: #{clcp_forward.1} parent=1 // pred_region
      _
    $region9: #{clcp_forward.1} parent=1 // pred_fallthru
      _
    // Predicated region
    $region10: #{clcp_forward.1} parent=1 // pred_check
      _
    $region11: #{clcp_forward.1} parent=1 // pred_check_branch
      %22 = sbr.rel (0) target = $region13
    $region12: #{clcp_forward.1} parent=1 // pred_region
      _
    $region13: #{clcp_forward.1} parent=1 // pred_fallthru
      _
    // Predicated region
    $region14: #{clcp_forward.1} parent=1 // pred_check
      _
    $region15: #{clcp_forward.1} parent=1 // pred_check_branch
      %24 = sbr.rel (0) target = $region17
    $region16: #{clcp_forward.1} parent=1 // pred_region
      _
    $region17: #{clcp_forward.1} parent=1 // pred_fallthru
      _
    // Predicated region
    $region18: #{clcp_forward.1} parent=1 // pred_check
      _
    $region19: #{clcp_forward.1} parent=1 // pred_check_branch
      %26 = sbr.rel (0) target = $region21
    $region20: #{clcp_forward.1} parent=1 // pred_region
      _
    $region21: #{clcp_forward.1} parent=1 // pred_fallthru
      _
    // Predicated region
    $region22: #{clcp_forward.1} parent=1 // pred_check
      _
    $region23: #{clcp_forward.1} parent=1 // pred_check_branch
      %28 = sbr.rel (0) target = $region25
    $region24: #{clcp_forward.1} parent=1 // pred_region
      _
    $region25: #{clcp_forward.1} parent=1 // pred_fallthru
      _
    // Predicated region
    $region26: #{clcp_forward.1} parent=1 // pred_check
      _
    $region27: #{clcp_forward.1} parent=1 // pred_check_branch
      %30 = sbr.rel (0) target = $region29
    $region28: #{clcp_forward.1} parent=1 // pred_region
      _
    $region29: #{clcp_forward.1} parent=1 // pred_fallthru
      _
    // Predicated region
    $region30: #{clcp_forward.1} parent=1 // pred_check
      _
    $region31: #{clcp_forward.1} parent=1 // pred_check_branch
      %32 = sbr.rel (0) target = $region33
    $region32: #{clcp_forward.1} parent=1 // pred_region
      _
    $region33: #{clcp_forward.1} parent=1 // pred_fallthru
      _
    // Predicated region
    $region34: #{clcp_forward.1} parent=1 // pred_check
      _
    $region35: #{clcp_forward.1} parent=1 // pred_check_branch
      %34 = sbr.rel (0) target = $region37
    $region36: #{clcp_forward.1} parent=1 // pred_region
      _
    $region37: #{clcp_forward.1} parent=1 // pred_fallthru
      _
    // Predicated region
    $region38: #{clcp_forward.1} parent=1 // pred_check
      _
    $region39: #{clcp_forward.1} parent=1 // pred_check_branch
      %36 = sbr.rel (0) target = $region41
    $region40: #{clcp_forward.1} parent=1 // pred_region
      _
    $region41: #{clcp_forward.1} parent=1 // pred_fallthru
      _
    // Predicated region
    $region42: #{clcp_forward.1} parent=1 // pred_check
      _
    $region43: #{clcp_forward.1} parent=1 // pred_check_branch
      %38 = sbr.rel (0) target = $region45
    $region44: #{clcp_forward.1} parent=1 // pred_region
      _
    $region45: #{clcp_forward.1} parent=1 // pred_fallthru
      _
    %v40 = vld [vmem:[%s0] sm:$0xff]
    %v41 = vld [vmem:[%s0 + $0x8] sm:$0xff]
    %v42 = vld [vmem:[%s0 + $0x10] sm:$0xff]
    %v43 = vld [vmem:[%s0 + $0x18] sm:$0xff]
    %v44 = vld [vmem:[%s0 + $0x20] sm:$0xff]
    %v45 = vld [vmem:[%s0 + $0x28] sm:$0xff]
    %v46 = vld [vmem:[%s0 + $0x30] sm:$0xff]
    %v47 = vld [vmem:[%s0 + $0x38] sm:$0xff]
    %v48 = vld [vmem:[%s0 + $0x40] sm:$0xff]
    %v49 = vld [vmem:[%s0 + $0x48] sm:$0xff]
    %v50 = vld [vmem:[%s0 + $0x50] sm:$0xff]
    %v51 = vld [vmem:[%s0 + $0x58] sm:$0xff]
    %v52 = vld [vmem:[%s0 + $0x60] sm:$0xff]
    %v53 = vld [vmem:[%s0 + $0x68] sm:$0xff]
    %v54 = vld [vmem:[%s0 + $0x70] sm:$0xff]
    %v55 = vld [vmem:[%s0 + $0x78] sm:$0xff]
    %v56 = vld [vmem:[%s0 + $0x80] sm:$0xff]
    %v57 = vld [vmem:[%s0 + $0x88] sm:$0xff]
    %v58 = vld [vmem:[%s0 + $0x90] sm:$0xff]
    %v59 = vld [vmem:[%s0 + $0x98] sm:$0xff]
    %v60 = vld [vmem:[%s0 + $0xa0] sm:$0xff]
    %v61 = vld [vmem:[%s0 + $0xa8] sm:$0xff]
    %v62 = vld [vmem:[%s0 + $0xb0] sm:$0xff]
    %v63 = vld [vmem:[%s0 + $0xb8] sm:$0xff]
    %v64 = vld [vmem:[%s0 + $0xc0] sm:$0xff]
    %v65 = vld [vmem:[%s0 + $0xc8] sm:$0xff]
    %v66 = vld [vmem:[%s0 + $0xd0] sm:$0xff]
    %v67 = vld [vmem:[%s0 + $0xd8] sm:$0xff]
    %v68 = vld [vmem:[%s0 + $0xe0] sm:$0xff]
    %v69 = vld [vmem:[%s0 + $0xe8] sm:$0xff]
    %v70 = vld [vmem:[%s0 + $0xf0] sm:$0xff]
    %v71 = vld [vmem:[%s0 + $0xf8] sm:$0xff]
    %v72 = vld [vmem:[%s0 + $0x100] sm:$0xff]
    %v73 = vld [vmem:[%s0 + $0x108] sm:$0xff]
    %v74 = vld [vmem:[%s0 + $0x110] sm:$0xff]
    %v75 = vld [vmem:[%s0 + $0x118] sm:$0xff]
    %v76 = vld [vmem:[%s0 + $0x120] sm:$0xff]
    %v77 = vld [vmem:[%s0 + $0x128] sm:$0xff]
    %v78 = vld [vmem:[%s0 + $0x130] sm:$0xff]
    %v79 = vld [vmem:[%s0 + $0x138] sm:$0xff]
    %v80 = vld [vmem:[%s0 + $0x140] sm:$0xff]
    %v81 = vld [vmem:[%s0 + $0x148] sm:$0xff]
    %v82 = vld [vmem:[%s0 + $0x150] sm:$0xff]
    %v83 = vld [vmem:[%s0 + $0x158] sm:$0xff]
    %v84 = vld [vmem:[%s0 + $0x160] sm:$0xff]
    %v85 = vld [vmem:[%s0 + $0x168] sm:$0xff]
    %v86 = vld [vmem:[%s0 + $0x170] sm:$0xff]
    %v87 = vld [vmem:[%s0 + $0x178] sm:$0xff]
    %v88 = vld [vmem:[%s0 + $0x180] sm:$0xff]
    %v89 = vld [vmem:[%s0 + $0x188] sm:$0xff]
    %v90 = vld [vmem:[%s0 + $0x190] sm:$0xff]
    %v91 = vld [vmem:[%s0 + $0x198] sm:$0xff]
    %v92 = vld [vmem:[%s0 + $0x1a0] sm:$0xff]
    %v93 = vld [vmem:[%s0 + $0x1a8] sm:$0xff]
    %v94 = vld [vmem:[%s0 + $0x1b0] sm:$0xff]
    %v95 = vld [vmem:[%s0 + $0x1b8] sm:$0xff]
    %v96 = vld [vmem:[%s0 + $0x1c0] sm:$0xff]
    %v97 = vld [vmem:[%s0 + $0x1c8] sm:$0xff]
    %v98 = vld [vmem:[%s0 + $0x1d0] sm:$0xff]
    %v99 = vld [vmem:[%s0 + $0x1d8] sm:$0xff]
    %v100 = vld [vmem:[%s0 + $0x1e0] sm:$0xff]
    %v101 = vld [vmem:[%s0 + $0x1e8] sm:$0xff]
    %v102 = vld [vmem:[%s0 + $0x1f0] sm:$0xff]
    %v103 = vld [vmem:[%s0 + $0x1f8] sm:$0xff]
    %v104 = vpack.c.bf16 %v41, %v40
    %v105 = vpack.c.bf16 %v43, %v42
    %v106 = vpack.c.bf16 %v45, %v44
    %v107 = vpack.c.bf16 %v47, %v46
    %v108 = vpack.c.bf16 %v49, %v48
    %v109 = vpack.c.bf16 %v51, %v50
    %v110 = vpack.c.bf16 %v53, %v52
    %v111 = vpack.c.bf16 %v55, %v54
    %v112 = vpack.c.bf16 %v57, %v56
    %v113 = vpack.c.bf16 %v59, %v58
    %v114 = vpack.c.bf16 %v61, %v60
    %v115 = vpack.c.bf16 %v63, %v62
    %v116 = vpack.c.bf16 %v65, %v64
    %v117 = vpack.c.bf16 %v67, %v66
    %v118 = vpack.c.bf16 %v69, %v68
    %v119 = vpack.c.bf16 %v71, %v70
    %v120 = vpack.c.bf16 %v73, %v72
    %v121 = vpack.c.bf16 %v75, %v74
    %v122 = vpack.c.bf16 %v77, %v76
    %v123 = vpack.c.bf16 %v79, %v78
    %v124 = vpack.c.bf16 %v81, %v80
    %v125 = vpack.c.bf16 %v83, %v82
    %v126 = vpack.c.bf16 %v85, %v84
    %v127 = vpack.c.bf16 %v87, %v86
    %v128 = vpack.c.bf16 %v89, %v88
    %v129 = vpack.c.bf16 %v91, %v90
    %v130 = vpack.c.bf16 %v93, %v92
    %v131 = vpack.c.bf16 %v95, %v94
    %v132 = vpack.c.bf16 %v97, %v96
    %v133 = vpack.c.bf16 %v99, %v98
    %v134 = vpack.c.bf16 %v101, %v100
    %v135 = vpack.c.bf16 %v103, %v102
    %v136 = vld [vmem:[%s1] sm:$0xf]
    %v137 = vld [vmem:[%s1 + $0x4] sm:$0xf]
    %v138 = vld [vmem:[%s1 + $0x8] sm:$0xf]
    %v139 = vld [vmem:[%s1 + $0xc] sm:$0xf]
    %v140 = vld [vmem:[%s1 + $0x10] sm:$0xf]
    %v141 = vld [vmem:[%s1 + $0x14] sm:$0xf]
    %v142 = vld [vmem:[%s1 + $0x18] sm:$0xf]
    %v143 = vld [vmem:[%s1 + $0x1c] sm:$0xf]
    %v144 = vld [vmem:[%s1 + $0x20] sm:$0xf]
    %v145 = vld [vmem:[%s1 + $0x24] sm:$0xf]
    %v146 = vld [vmem:[%s1 + $0x28] sm:$0xf]
    %v147 = vld [vmem:[%s1 + $0x2c] sm:$0xf]
    %v148 = vld [vmem:[%s1 + $0x30] sm:$0xf]
    %v149 = vld [vmem:[%s1 + $0x34] sm:$0xf]
    %v150 = vld [vmem:[%s1 + $0x38] sm:$0xf]
    %v151 = vld [vmem:[%s1 + $0x3c] sm:$0xf]
    %v152 = vld [vmem:[%s2] sm:$0x1]
    %v154 = vlaneseq
    %v155 = vshrl.u32 %v154, 7
    %v156 = vsub.s32 0, %v155
    %v157 = vrot.slane %v152, %v156
    %v175 = vunpack.c.l.b16 %v136
    %v176 = vunpack.c.l.b16 %v137
    %v177 = vunpack.c.l.b16 %v138
    %v178 = vunpack.c.l.b16 %v139
    %v179 = vunpack.c.l.b16 %v140
    %v180 = vunpack.c.l.b16 %v141
    %v181 = vunpack.c.l.b16 %v142
    %v182 = vunpack.c.l.b16 %v143
    %v183 = vunpack.c.l.b16 %v144
    %v184 = vunpack.c.l.b16 %v145
    %v185 = vunpack.c.l.b16 %v146
    %v186 = vunpack.c.l.b16 %v147
    %v187 = vunpack.c.l.b16 %v148
    %v188 = vunpack.c.l.b16 %v149
    %v189 = vunpack.c.l.b16 %v150
    %v190 = vunpack.c.l.b16 %v151
    %v191 = vpack.c.b16 %v176, %v175
    %v192 = vpack.c.b16 %v178, %v177
    %v193 = vpack.c.b16 %v180, %v179
    %v194 = vpack.c.b16 %v182, %v181
    %v195 = vpack.c.b16 %v184, %v183
    %v196 = vpack.c.b16 %v186, %v185
    %v197 = vpack.c.b16 %v188, %v187
    %v198 = vpack.c.b16 %v190, %v189
    %207 = vmatprep.subr.bf16.mxu0 0
    %208 = vmatpush1.bf16.msra.mxu0 %v191
    %209 = vmatprep.subr.bf16.mxu0 0
    %210 = vmatpush1.bf16.msra.mxu0 %v192
    %211 = vmatprep.subr.bf16.mxu0 0
    %212 = vmatpush1.bf16.msra.mxu0 %v193
    %213 = vmatprep.subr.bf16.mxu0 0
    %214 = vmatpush1.bf16.msra.mxu0 %v194
    %215 = vmatprep.subr.bf16.mxu0 0
    %216 = vmatpush1.bf16.msra.mxu0 %v195
    %217 = vmatprep.subr.bf16.mxu0 0
    %218 = vmatpush1.bf16.msra.mxu0 %v196
    %219 = vmatprep.subr.bf16.mxu0 0
    %220 = vmatpush1.bf16.msra.mxu0 %v197
    %221 = vmatprep.subr.bf16.mxu0 0
    %222 = vmatpush1.bf16.msra.mxu0 %v198
    %223 = vmatprep.subr.bf16.mxu0 0
    %224 = vmatpush1.bf16.msra.mxu0 0
    %225 = vmatprep.subr.bf16.mxu0 0
    %226 = vmatpush1.bf16.msra.mxu0 0
    %227 = vmatprep.subr.bf16.mxu0 0
    %228 = vmatpush1.bf16.msra.mxu0 0
    %229 = vmatprep.subr.bf16.mxu0 0
    %230 = vmatpush1.bf16.msra.mxu0 0
    %231 = vmatprep.subr.bf16.mxu0 0
    %232 = vmatpush1.bf16.msra.mxu0 0
    %233 = vmatprep.subr.bf16.mxu0 0
    %234 = vmatpush1.bf16.msra.mxu0 0
    %235 = vmatprep.subr.bf16.mxu0 0
    %236 = vmatpush1.bf16.msra.mxu0 0
    %237 = vmatprep.subr.bf16.mxu0 0
    %238 = vmatpush1.bf16.msra.mxu0 0
    %239 = vmatprep.mubr.bf16.mxu0 0
    %240 = vmatmul.mubr.bf16.gmra.mrb[0].mxu0 %v104
    %v241 = vpop.f32.mrb[0].mxu0
    %v242 = vadd.f32 %v157, %v241
    %v243 = vpop.f32.mrb[0].mxu0
    %v244 = vpop.f32.mrb[0].mxu0
    %v245 = vadd.f32 %v157, %v244
    %v246 = vpop.f32.mrb[0].mxu0
    %247 = vmatprep.mubr.bf16.mxu0 0
    %248 = vmatmul.mubr.bf16.gmra.mrb[0].mxu0 %v105
    %v249 = vpop.f32.mrb[0].mxu0
    %v250 = vadd.f32 %v157, %v249
    %v251 = vpop.f32.mrb[0].mxu0
    %v252 = vpop.f32.mrb[0].mxu0
    %v253 = vadd.f32 %v157, %v252
    %v254 = vpop.f32.mrb[0].mxu0
    %255 = vmatprep.mubr.bf16.mxu0 0
    %256 = vmatmul.mubr.bf16.gmra.mrb[0].mxu0 %v106
    %v257 = vpop.f32.mrb[0].mxu0
    %v258 = vadd.f32 %v157, %v257
    %v259 = vpop.f32.mrb[0].mxu0
    %v260 = vpop.f32.mrb[0].mxu0
    %v261 = vadd.f32 %v157, %v260
    %v262 = vpop.f32.mrb[0].mxu0
    %263 = vmatprep.mubr.bf16.mxu0 0
    %264 = vmatmul.mubr.bf16.gmra.mrb[0].mxu0 %v107
    %v265 = vpop.f32.mrb[0].mxu0
    %v266 = vadd.f32 %v157, %v265
    %v267 = vpop.f32.mrb[0].mxu0
    %v268 = vpop.f32.mrb[0].mxu0
    %v269 = vadd.f32 %v157, %v268
    %v270 = vpop.f32.mrb[0].mxu0
    %271 = vmatprep.mubr.bf16.mxu0 0
    %272 = vmatmul.mubr.bf16.gmra.mrb[0].mxu0 %v108
    %v273 = vpop.f32.mrb[0].mxu0
    %v274 = vadd.f32 %v157, %v273
    %v275 = vpop.f32.mrb[0].mxu0
    %v276 = vpop.f32.mrb[0].mxu0
    %v277 = vadd.f32 %v157, %v276
    %v278 = vpop.f32.mrb[0].mxu0
    %279 = vmatprep.mubr.bf16.mxu0 0
    %280 = vmatmul.mubr.bf16.gmra.mrb[0].mxu0 %v109
    %v281 = vpop.f32.mrb[0].mxu0
    %v282 = vadd.f32 %v157, %v281
    %v283 = vpop.f32.mrb[0].mxu0
    %v284 = vpop.f32.mrb[0].mxu0
    %v285 = vadd.f32 %v157, %v284
    %v286 = vpop.f32.mrb[0].mxu0
    %287 = vmatprep.mubr.bf16.mxu0 0
    %288 = vmatmul.mubr.bf16.gmra.mrb[0].mxu0 %v110
    %v289 = vpop.f32.mrb[0].mxu0
    %v290 = vadd.f32 %v157, %v289
    %v291 = vpop.f32.mrb[0].mxu0
    %v292 = vpop.f32.mrb[0].mxu0
    %v293 = vadd.f32 %v157, %v292
    %v294 = vpop.f32.mrb[0].mxu0
    %295 = vmatprep.mubr.bf16.mxu0 0
    %296 = vmatmul.mubr.bf16.gmra.mrb[0].mxu0 %v111
    %v297 = vpop.f32.mrb[0].mxu0
    %v298 = vadd.f32 %v157, %v297
    %v299 = vpop.f32.mrb[0].mxu0
    %v300 = vpop.f32.mrb[0].mxu0
    %v301 = vadd.f32 %v157, %v300
    %v302 = vpop.f32.mrb[0].mxu0
    %303 = vmatprep.mubr.bf16.mxu0 0
    %304 = vmatmul.mubr.bf16.gmra.mrb[0].mxu0 %v112
    %v305 = vpop.f32.mrb[0].mxu0
    %v306 = vadd.f32 %v157, %v305
    %v307 = vpop.f32.mrb[0].mxu0
    %v308 = vpop.f32.mrb[0].mxu0
    %v309 = vadd.f32 %v157, %v308
    %v310 = vpop.f32.mrb[0].mxu0
    %311 = vmatprep.mubr.bf16.mxu0 0
    %312 = vmatmul.mubr.bf16.gmra.mrb[0].mxu0 %v113
    %v313 = vpop.f32.mrb[0].mxu0
    %v314 = vadd.f32 %v157, %v313
    %v315 = vpop.f32.mrb[0].mxu0
    %v316 = vpop.f32.mrb[0].mxu0
    %v317 = vadd.f32 %v157, %v316
    %v318 = vpop.f32.mrb[0].mxu0
    %319 = vmatprep.mubr.bf16.mxu0 0
    %320 = vmatmul.mubr.bf16.gmra.mrb[0].mxu0 %v114
    %v321 = vpop.f32.mrb[0].mxu0
    %v322 = vadd.f32 %v157, %v321
    %v323 = vpop.f32.mrb[0].mxu0
    %v324 = vpop.f32.mrb[0].mxu0
    %v325 = vadd.f32 %v157, %v324
    %v326 = vpop.f32.mrb[0].mxu0
    %327 = vmatprep.mubr.bf16.mxu0 0
    %328 = vmatmul.mubr.bf16.gmra.mrb[0].mxu0 %v115
    %v329 = vpop.f32.mrb[0].mxu0
    %v330 = vadd.f32 %v157, %v329
    %v331 = vpop.f32.mrb[0].mxu0
    %v332 = vpop.f32.mrb[0].mxu0
    %v333 = vadd.f32 %v157, %v332
    %v334 = vpop.f32.mrb[0].mxu0
    %335 = vmatprep.mubr.bf16.mxu0 0
    %336 = vmatmul.mubr.bf16.gmra.mrb[0].mxu0 %v116
    %v337 = vpop.f32.mrb[0].mxu0
    %v338 = vadd.f32 %v157, %v337
    %v339 = vpop.f32.mrb[0].mxu0
    %v340 = vpop.f32.mrb[0].mxu0
    %v341 = vadd.f32 %v157, %v340
    %v342 = vpop.f32.mrb[0].mxu0
    %343 = vmatprep.mubr.bf16.mxu0 0
    %344 = vmatmul.mubr.bf16.gmra.mrb[0].mxu0 %v117
    %v345 = vpop.f32.mrb[0].mxu0
    %v346 = vadd.f32 %v157, %v345
    %v347 = vpop.f32.mrb[0].mxu0
    %v348 = vpop.f32.mrb[0].mxu0
    %v349 = vadd.f32 %v157, %v348
    %v350 = vpop.f32.mrb[0].mxu0
    %351 = vmatprep.mubr.bf16.mxu0 0
    %352 = vmatmul.mubr.bf16.gmra.mrb[0].mxu0 %v118
    %v353 = vpop.f32.mrb[0].mxu0
    %v354 = vadd.f32 %v157, %v353
    %v355 = vpop.f32.mrb[0].mxu0
    %v356 = vpop.f32.mrb[0].mxu0
    %v357 = vadd.f32 %v157, %v356
    %v358 = vpop.f32.mrb[0].mxu0
    %359 = vmatprep.mubr.bf16.mxu0 0
    %360 = vmatmul.mubr.bf16.gmra.mrb[0].mxu0 %v119
    %v361 = vpop.f32.mrb[0].mxu0
    %v362 = vadd.f32 %v157, %v361
    %v363 = vpop.f32.mrb[0].mxu0
    %v364 = vpop.f32.mrb[0].mxu0
    %v365 = vadd.f32 %v157, %v364
    %v366 = vpop.f32.mrb[0].mxu0
    %367 = vmatprep.mubr.bf16.mxu0 0
    %368 = vmatmul.mubr.bf16.gmra.mrb[0].mxu0 %v120
    %v369 = vpop.f32.mrb[0].mxu0
    %v370 = vadd.f32 %v157, %v369
    %v371 = vpop.f32.mrb[0].mxu0
    %v372 = vpop.f32.mrb[0].mxu0
    %v373 = vadd.f32 %v157, %v372
    %v374 = vpop.f32.mrb[0].mxu0
    %375 = vmatprep.mubr.bf16.mxu0 0
    %376 = vmatmul.mubr.bf16.gmra.mrb[0].mxu0 %v121
    %v377 = vpop.f32.mrb[0].mxu0
    %v378 = vadd.f32 %v157, %v377
    %v379 = vpop.f32.mrb[0].mxu0
    %v380 = vpop.f32.mrb[0].mxu0
    %v381 = vadd.f32 %v157, %v380
    %v382 = vpop.f32.mrb[0].mxu0
    %383 = vmatprep.mubr.bf16.mxu0 0
    %384 = vmatmul.mubr.bf16.gmra.mrb[0].mxu0 %v122
    %v385 = vpop.f32.mrb[0].mxu0
    %v386 = vadd.f32 %v157, %v385
    %v387 = vpop.f32.mrb[0].mxu0
    %v388 = vpop.f32.mrb[0].mxu0
    %v389 = vadd.f32 %v157, %v388
    %v390 = vpop.f32.mrb[0].mxu0
    %391 = vmatprep.mubr.bf16.mxu0 0
    %392 = vmatmul.mubr.bf16.gmra.mrb[0].mxu0 %v123
    %v393 = vpop.f32.mrb[0].mxu0
    %v394 = vadd.f32 %v157, %v393
    %v395 = vpop.f32.mrb[0].mxu0
    %v396 = vpop.f32.mrb[0].mxu0
    %v397 = vadd.f32 %v157, %v396
    %v398 = vpop.f32.mrb[0].mxu0
    %399 = vmatprep.mubr.bf16.mxu0 0
    %400 = vmatmul.mubr.bf16.gmra.mrb[0].mxu0 %v124
    %v401 = vpop.f32.mrb[0].mxu0
    %v402 = vadd.f32 %v157, %v401
    %v403 = vpop.f32.mrb[0].mxu0
    %v404 = vpop.f32.mrb[0].mxu0
    %v405 = vadd.f32 %v157, %v404
    %v406 = vpop.f32.mrb[0].mxu0
    %407 = vmatprep.mubr.bf16.mxu0 0
    %408 = vmatmul.mubr.bf16.gmra.mrb[0].mxu0 %v125
    %v409 = vpop.f32.mrb[0].mxu0
    %v410 = vadd.f32 %v157, %v409
    %v411 = vpop.f32.mrb[0].mxu0
    %v412 = vpop.f32.mrb[0].mxu0
    %v413 = vadd.f32 %v157, %v412
    %v414 = vpop.f32.mrb[0].mxu0
    %415 = vmatprep.mubr.bf16.mxu0 0
    %416 = vmatmul.mubr.bf16.gmra.mrb[0].mxu0 %v126
    %v417 = vpop.f32.mrb[0].mxu0
    %v418 = vadd.f32 %v157, %v417
    %v419 = vpop.f32.mrb[0].mxu0
    %v420 = vpop.f32.mrb[0].mxu0
    %v421 = vadd.f32 %v157, %v420
    %v422 = vpop.f32.mrb[0].mxu0
    %423 = vmatprep.mubr.bf16.mxu0 0
    %424 = vmatmul.mubr.bf16.gmra.mrb[0].mxu0 %v127
    %v425 = vpop.f32.mrb[0].mxu0
    %v426 = vadd.f32 %v157, %v425
    %v427 = vpop.f32.mrb[0].mxu0
    %v428 = vpop.f32.mrb[0].mxu0
    %v429 = vadd.f32 %v157, %v428
    %v430 = vpop.f32.mrb[0].mxu0
    %431 = vmatprep.mubr.bf16.mxu0 0
    %432 = vmatmul.mubr.bf16.gmra.mrb[0].mxu0 %v128
    %v433 = vpop.f32.mrb[0].mxu0
    %v434 = vadd.f32 %v157, %v433
    %v435 = vpop.f32.mrb[0].mxu0
    %v436 = vpop.f32.mrb[0].mxu0
    %v437 = vadd.f32 %v157, %v436
    %v438 = vpop.f32.mrb[0].mxu0
    %439 = vmatprep.mubr.bf16.mxu0 0
    %440 = vmatmul.mubr.bf16.gmra.mrb[0].mxu0 %v129
    %v441 = vpop.f32.mrb[0].mxu0
    %v442 = vadd.f32 %v157, %v441
    %v443 = vpop.f32.mrb[0].mxu0
    %v444 = vpop.f32.mrb[0].mxu0
    %v445 = vadd.f32 %v157, %v444
    %v446 = vpop.f32.mrb[0].mxu0
    %447 = vmatprep.mubr.bf16.mxu0 0
    %448 = vmatmul.mubr.bf16.gmra.mrb[0].mxu0 %v130
    %v449 = vpop.f32.mrb[0].mxu0
    %v450 = vadd.f32 %v157, %v449
    %v451 = vpop.f32.mrb[0].mxu0
    %v452 = vpop.f32.mrb[0].mxu0
    %v453 = vadd.f32 %v157, %v452
    %v454 = vpop.f32.mrb[0].mxu0
    %455 = vmatprep.mubr.bf16.mxu0 0
    %456 = vmatmul.mubr.bf16.gmra.mrb[0].mxu0 %v131
    %v457 = vpop.f32.mrb[0].mxu0
    %v458 = vadd.f32 %v157, %v457
    %v459 = vpop.f32.mrb[0].mxu0
    %v460 = vpop.f32.mrb[0].mxu0
    %v461 = vadd.f32 %v157, %v460
    %v462 = vpop.f32.mrb[0].mxu0
    %463 = vmatprep.mubr.bf16.mxu0 0
    %464 = vmatmul.mubr.bf16.gmra.mrb[0].mxu0 %v132
    %v465 = vpop.f32.mrb[0].mxu0
    %v466 = vadd.f32 %v157, %v465
    %v467 = vpop.f32.mrb[0].mxu0
    %v468 = vpop.f32.mrb[0].mxu0
    %v469 = vadd.f32 %v157, %v468
    %v470 = vpop.f32.mrb[0].mxu0
    %471 = vmatprep.mubr.bf16.mxu0 0
    %472 = vmatmul.mubr.bf16.gmra.mrb[0].mxu0 %v133
    %v473 = vpop.f32.mrb[0].mxu0
    %v474 = vadd.f32 %v157, %v473
    %v475 = vpop.f32.mrb[0].mxu0
    %v476 = vpop.f32.mrb[0].mxu0
    %v477 = vadd.f32 %v157, %v476
    %v478 = vpop.f32.mrb[0].mxu0
    %479 = vmatprep.mubr.bf16.mxu0 0
    %480 = vmatmul.mubr.bf16.gmra.mrb[0].mxu0 %v134
    %v481 = vpop.f32.mrb[0].mxu0
    %v482 = vadd.f32 %v157, %v481
    %v483 = vpop.f32.mrb[0].mxu0
    %v484 = vpop.f32.mrb[0].mxu0
    %v485 = vadd.f32 %v157, %v484
    %v486 = vpop.f32.mrb[0].mxu0
    %487 = vmatprep.mubr.bf16.mxu0 0
    %488 = vmatmul.mubr.bf16.gmra.mrb[0].mxu0 %v135
    %v489 = vpop.f32.mrb[0].mxu0
    %v490 = vadd.f32 %v157, %v489
    %v491 = vpop.f32.mrb[0].mxu0
    %v492 = vpop.f32.mrb[0].mxu0
    %v493 = vadd.f32 %v157, %v492
    %v494 = vpop.f32.mrb[0].mxu0
    %495 = vdwg.mxu0
    %v496 = vmax.f32 %v242, 0.0
    %v497 = vmax.f32 %v245, 0.0
    %v498 = vmax.f32 %v250, 0.0
    %v499 = vmax.f32 %v253, 0.0
    %v500 = vmax.f32 %v258, 0.0
    %v501 = vmax.f32 %v261, 0.0
    %v502 = vmax.f32 %v266, 0.0
    %v503 = vmax.f32 %v269, 0.0
    %v504 = vmax.f32 %v274, 0.0
    %v505 = vmax.f32 %v277, 0.0
    %v506 = vmax.f32 %v282, 0.0
    %v507 = vmax.f32 %v285, 0.0
    %v508 = vmax.f32 %v290, 0.0
    %v509 = vmax.f32 %v293, 0.0
    %v510 = vmax.f32 %v298, 0.0
    %v511 = vmax.f32 %v301, 0.0
    %v512 = vmax.f32 %v306, 0.0
    %v513 = vmax.f32 %v309, 0.0
    %v514 = vmax.f32 %v314, 0.0
    %v515 = vmax.f32 %v317, 0.0
    %v516 = vmax.f32 %v322, 0.0
    %v517 = vmax.f32 %v325, 0.0
    %v518 = vmax.f32 %v330, 0.0
    %v519 = vmax.f32 %v333, 0.0
    %v520 = vmax.f32 %v338, 0.0
    %v521 = vmax.f32 %v341, 0.0
    %v522 = vmax.f32 %v346, 0.0
    %v523 = vmax.f32 %v349, 0.0
    %v524 = vmax.f32 %v354, 0.0
    %v525 = vmax.f32 %v357, 0.0
    %v526 = vmax.f32 %v362, 0.0
    %v527 = vmax.f32 %v365, 0.0
    %v528 = vmax.f32 %v370, 0.0
    %v529 = vmax.f32 %v373, 0.0
    %v530 = vmax.f32 %v378, 0.0
    %v531 = vmax.f32 %v381, 0.0
    %v532 = vmax.f32 %v386, 0.0
    %v533 = vmax.f32 %v389, 0.0
    %v534 = vmax.f32 %v394, 0.0
    %v535 = vmax.f32 %v397, 0.0
    %v536 = vmax.f32 %v402, 0.0
    %v537 = vmax.f32 %v405, 0.0
    %v538 = vmax.f32 %v410, 0.0
    %v539 = vmax.f32 %v413, 0.0
    %v540 = vmax.f32 %v418, 0.0
    %v541 = vmax.f32 %v421, 0.0
    %v542 = vmax.f32 %v426, 0.0
    %v543 = vmax.f32 %v429, 0.0
    %v544 = vmax.f32 %v434, 0.0
    %v545 = vmax.f32 %v437, 0.0
    %v546 = vmax.f32 %v442, 0.0
    %v547 = vmax.f32 %v445, 0.0
    %v548 = vmax.f32 %v450, 0.0
    %v549 = vmax.f32 %v453, 0.0
    %v550 = vmax.f32 %v458, 0.0
    %v551 = vmax.f32 %v461, 0.0
    %v552 = vmax.f32 %v466, 0.0
    %v553 = vmax.f32 %v469, 0.0
    %v554 = vmax.f32 %v474, 0.0
    %v555 = vmax.f32 %v477, 0.0
    %v556 = vmax.f32 %v482, 0.0
    %v557 = vmax.f32 %v485, 0.0
    %v558 = vmax.f32 %v490, 0.0
    %v559 = vmax.f32 %v493, 0.0
    %v560 = vpack.c.bf16 %v497, %v496
    %v561 = vpack.c.bf16 %v499, %v498
    %v562 = vpack.c.bf16 %v501, %v500
    %v563 = vpack.c.bf16 %v503, %v502
    %v564 = vpack.c.bf16 %v505, %v504
    %v565 = vpack.c.bf16 %v507, %v506
    %v566 = vpack.c.bf16 %v509, %v508
    %v567 = vpack.c.bf16 %v511, %v510
    %v568 = vpack.c.bf16 %v513, %v512
    %v569 = vpack.c.bf16 %v515, %v514
    %v570 = vpack.c.bf16 %v517, %v516
    %v571 = vpack.c.bf16 %v519, %v518
    %v572 = vpack.c.bf16 %v521, %v520
    %v573 = vpack.c.bf16 %v523, %v522
    %v574 = vpack.c.bf16 %v525, %v524
    %v575 = vpack.c.bf16 %v527, %v526
    %v576 = vpack.c.bf16 %v529, %v528
    %v577 = vpack.c.bf16 %v531, %v530
    %v578 = vpack.c.bf16 %v533, %v532
    %v579 = vpack.c.bf16 %v535, %v534
    %v580 = vpack.c.bf16 %v537, %v536
    %v581 = vpack.c.bf16 %v539, %v538
    %v582 = vpack.c.bf16 %v541, %v540
    %v583 = vpack.c.bf16 %v543, %v542
    %v584 = vpack.c.bf16 %v545, %v544
    %v585 = vpack.c.bf16 %v547, %v546
    %v586 = vpack.c.bf16 %v549, %v548
    %v587 = vpack.c.bf16 %v551, %v550
    %v588 = vpack.c.bf16 %v553, %v552
    %v589 = vpack.c.bf16 %v555, %v554
    %v590 = vpack.c.bf16 %v557, %v556
    %v591 = vpack.c.bf16 %v559, %v558
    %v592 = vld [vmem:[%s3] sm:$0xf]
    %v593 = vld [vmem:[%s3 + $0x4] sm:$0xf]
    %v594 = vld [vmem:[%s3 + $0x8] sm:$0xf]
    %v595 = vld [vmem:[%s3 + $0xc] sm:$0xf]
    %v596 = vld [vmem:[%s3 + $0x10] sm:$0xf]
    %v597 = vld [vmem:[%s3 + $0x14] sm:$0xf]
    %v598 = vld [vmem:[%s3 + $0x18] sm:$0xf]
    %v599 = vld [vmem:[%s3 + $0x1c] sm:$0xf]
    %v600 = vld [vmem:[%s3 + $0x20] sm:$0xf]
    %v601 = vld [vmem:[%s3 + $0x24] sm:$0xf]
    %v602 = vld [vmem:[%s3 + $0x28] sm:$0xf]
    %v603 = vld [vmem:[%s3 + $0x2c] sm:$0xf]
    %v604 = vld [vmem:[%s3 + $0x30] sm:$0xf]
    %v605 = vld [vmem:[%s3 + $0x34] sm:$0xf]
    %v606 = vld [vmem:[%s3 + $0x38] sm:$0xf]
    %v607 = vld [vmem:[%s3 + $0x3c] sm:$0xf]
    %v608 = vld [vmem:[%s4] sm:$0x1]
    %v610 = vlaneseq
    %v611 = vshrl.u32 %v610, 7
    %v612 = vsub.s32 0, %v611
    %v613 = vrot.slane %v608, %v612
    %v631 = vunpack.c.l.b16 %v592
    %v632 = vunpack.c.l.b16 %v593
    %v633 = vunpack.c.l.b16 %v594
    %v634 = vunpack.c.l.b16 %v595
    %v635 = vunpack.c.l.b16 %v596
    %v636 = vunpack.c.l.b16 %v597
    %v637 = vunpack.c.l.b16 %v598
    %v638 = vunpack.c.l.b16 %v599
    %v639 = vunpack.c.l.b16 %v600
    %v640 = vunpack.c.l.b16 %v601
    %v641 = vunpack.c.l.b16 %v602
    %v642 = vunpack.c.l.b16 %v603
    %v643 = vunpack.c.l.b16 %v604
    %v644 = vunpack.c.l.b16 %v605
    %v645 = vunpack.c.l.b16 %v606
    %v646 = vunpack.c.l.b16 %v607
    %v647 = vpack.c.b16 %v632, %v631
    %v648 = vpack.c.b16 %v634, %v633
    %v649 = vpack.c.b16 %v636, %v635
    %v650 = vpack.c.b16 %v638, %v637
    %v651 = vpack.c.b16 %v640, %v639
    %v652 = vpack.c.b16 %v642, %v641
    %v653 = vpack.c.b16 %v644, %v643
    %v654 = vpack.c.b16 %v646, %v645
    %663 = vmatprep.subr.bf16.mxu0 0
    %664 = vmatpush1.bf16.msra.mxu0 %v647
    %665 = vmatprep.subr.bf16.mxu0 0
    %666 = vmatpush1.bf16.msra.mxu0 %v648
    %667 = vmatprep.subr.bf16.mxu0 0
    %668 = vmatpush1.bf16.msra.mxu0 %v649
    %669 = vmatprep.subr.bf16.mxu0 0
    %670 = vmatpush1.bf16.msra.mxu0 %v650
    %671 = vmatprep.subr.bf16.mxu0 0
    %672 = vmatpush1.bf16.msra.mxu0 %v651
    %673 = vmatprep.subr.bf16.mxu0 0
    %674 = vmatpush1.bf16.msra.mxu0 %v652
    %675 = vmatprep.subr.bf16.mxu0 0
    %676 = vmatpush1.bf16.msra.mxu0 %v653
    %677 = vmatprep.subr.bf16.mxu0 0
    %678 = vmatpush1.bf16.msra.mxu0 %v654
    %679 = vmatprep.subr.bf16.mxu0 0
    %680 = vmatpush1.bf16.msra.mxu0 0
    %681 = vmatprep.subr.bf16.mxu0 0
    %682 = vmatpush1.bf16.msra.mxu0 0
    %683 = vmatprep.subr.bf16.mxu0 0
    %684 = vmatpush1.bf16.msra.mxu0 0
    %685 = vmatprep.subr.bf16.mxu0 0
    %686 = vmatpush1.bf16.msra.mxu0 0
    %687 = vmatprep.subr.bf16.mxu0 0
    %688 = vmatpush1.bf16.msra.mxu0 0
    %689 = vmatprep.subr.bf16.mxu0 0
    %690 = vmatpush1.bf16.msra.mxu0 0
    %691 = vmatprep.subr.bf16.mxu0 0
    %692 = vmatpush1.bf16.msra.mxu0 0
    %693 = vmatprep.subr.bf16.mxu0 0
    %694 = vmatpush1.bf16.msra.mxu0 0
    %695 = vmatprep.mubr.bf16.mxu0 0
    %696 = vmatmul.mubr.bf16.gmra.mrb[0].mxu0 %v560
    %v697 = vpop.f32.mrb[0].mxu0
    %v698 = vadd.f32 %v613, %v697
    %v699 = vpop.f32.mrb[0].mxu0
    %v700 = vpop.f32.mrb[0].mxu0
    %v701 = vadd.f32 %v613, %v700
    %v702 = vpop.f32.mrb[0].mxu0
    %703 = vmatprep.mubr.bf16.mxu0 0
    %704 = vmatmul.mubr.bf16.gmra.mrb[0].mxu0 %v561
    %v705 = vpop.f32.mrb[0].mxu0
    %v706 = vadd.f32 %v613, %v705
    %v707 = vpop.f32.mrb[0].mxu0
    %v708 = vpop.f32.mrb[0].mxu0
    %v709 = vadd.f32 %v613, %v708
    %v710 = vpop.f32.mrb[0].mxu0
    %711 = vmatprep.mubr.bf16.mxu0 0
    %712 = vmatmul.mubr.bf16.gmra.mrb[0].mxu0 %v562
    %v713 = vpop.f32.mrb[0].mxu0
    %v714 = vadd.f32 %v613, %v713
    %v715 = vpop.f32.mrb[0].mxu0
    %v716 = vpop.f32.mrb[0].mxu0
    %v717 = vadd.f32 %v613, %v716
    %v718 = vpop.f32.mrb[0].mxu0
    %719 = vmatprep.mubr.bf16.mxu0 0
    %720 = vmatmul.mubr.bf16.gmra.mrb[0].mxu0 %v563
    %v721 = vpop.f32.mrb[0].mxu0
    %v722 = vadd.f32 %v613, %v721
    %v723 = vpop.f32.mrb[0].mxu0
    %v724 = vpop.f32.mrb[0].mxu0
    %v725 = vadd.f32 %v613, %v724
    %v726 = vpop.f32.mrb[0].mxu0
    %727 = vmatprep.mubr.bf16.mxu0 0
    %728 = vmatmul.mubr.bf16.gmra.mrb[0].mxu0 %v564
    %v729 = vpop.f32.mrb[0].mxu0
    %v730 = vadd.f32 %v613, %v729
    %v731 = vpop.f32.mrb[0].mxu0
    %v732 = vpop.f32.mrb[0].mxu0
    %v733 = vadd.f32 %v613, %v732
    %v734 = vpop.f32.mrb[0].mxu0
    %735 = vmatprep.mubr.bf16.mxu0 0
    %736 = vmatmul.mubr.bf16.gmra.mrb[0].mxu0 %v565
    %v737 = vpop.f32.mrb[0].mxu0
    %v738 = vadd.f32 %v613, %v737
    %v739 = vpop.f32.mrb[0].mxu0
    %v740 = vpop.f32.mrb[0].mxu0
    %v741 = vadd.f32 %v613, %v740
    %v742 = vpop.f32.mrb[0].mxu0
    %743 = vmatprep.mubr.bf16.mxu0 0
    %744 = vmatmul.mubr.bf16.gmra.mrb[0].mxu0 %v566
    %v745 = vpop.f32.mrb[0].mxu0
    %v746 = vadd.f32 %v613, %v745
    %v747 = vpop.f32.mrb[0].mxu0
    %v748 = vpop.f32.mrb[0].mxu0
    %v749 = vadd.f32 %v613, %v748
    %v750 = vpop.f32.mrb[0].mxu0
    %751 = vmatprep.mubr.bf16.mxu0 0
    %752 = vmatmul.mubr.bf16.gmra.mrb[0].mxu0 %v567
    %v753 = vpop.f32.mrb[0].mxu0
    %v754 = vadd.f32 %v613, %v753
    %v755 = vpop.f32.mrb[0].mxu0
    %v756 = vpop.f32.mrb[0].mxu0
    %v757 = vadd.f32 %v613, %v756
    %v758 = vpop.f32.mrb[0].mxu0
    %759 = vmatprep.mubr.bf16.mxu0 0
    %760 = vmatmul.mubr.bf16.gmra.mrb[0].mxu0 %v568
    %v761 = vpop.f32.mrb[0].mxu0
    %v762 = vadd.f32 %v613, %v761
    %v763 = vpop.f32.mrb[0].mxu0
    %v764 = vpop.f32.mrb[0].mxu0
    %v765 = vadd.f32 %v613, %v764
    %v766 = vpop.f32.mrb[0].mxu0
    %767 = vmatprep.mubr.bf16.mxu0 0
    %768 = vmatmul.mubr.bf16.gmra.mrb[0].mxu0 %v569
    %v769 = vpop.f32.mrb[0].mxu0
    %v770 = vadd.f32 %v613, %v769
    %v771 = vpop.f32.mrb[0].mxu0
    %v772 = vpop.f32.mrb[0].mxu0
    %v773 = vadd.f32 %v613, %v772
    %v774 = vpop.f32.mrb[0].mxu0
    %775 = vmatprep.mubr.bf16.mxu0 0
    %776 = vmatmul.mubr.bf16.gmra.mrb[0].mxu0 %v570
    %v777 = vpop.f32.mrb[0].mxu0
    %v778 = vadd.f32 %v613, %v777
    %v779 = vpop.f32.mrb[0].mxu0
    %v780 = vpop.f32.mrb[0].mxu0
    %v781 = vadd.f32 %v613, %v780
    %v782 = vpop.f32.mrb[0].mxu0
    %783 = vmatprep.mubr.bf16.mxu0 0
    %784 = vmatmul.mubr.bf16.gmra.mrb[0].mxu0 %v571
    %v785 = vpop.f32.mrb[0].mxu0
    %v786 = vadd.f32 %v613, %v785
    %v787 = vpop.f32.mrb[0].mxu0
    %v788 = vpop.f32.mrb[0].mxu0
    %v789 = vadd.f32 %v613, %v788
    %v790 = vpop.f32.mrb[0].mxu0
    %791 = vmatprep.mubr.bf16.mxu0 0
    %792 = vmatmul.mubr.bf16.gmra.mrb[0].mxu0 %v572
    %v793 = vpop.f32.mrb[0].mxu0
    %v794 = vadd.f32 %v613, %v793
    %v795 = vpop.f32.mrb[0].mxu0
    %v796 = vpop.f32.mrb[0].mxu0
    %v797 = vadd.f32 %v613, %v796
    %v798 = vpop.f32.mrb[0].mxu0
    %799 = vmatprep.mubr.bf16.mxu0 0
    %800 = vmatmul.mubr.bf16.gmra.mrb[0].mxu0 %v573
    %v801 = vpop.f32.mrb[0].mxu0
    %v802 = vadd.f32 %v613, %v801
    %v803 = vpop.f32.mrb[0].mxu0
    %v804 = vpop.f32.mrb[0].mxu0
    %v805 = vadd.f32 %v613, %v804
    %v806 = vpop.f32.mrb[0].mxu0
    %807 = vmatprep.mubr.bf16.mxu0 0
    %808 = vmatmul.mubr.bf16.gmra.mrb[0].mxu0 %v574
    %v809 = vpop.f32.mrb[0].mxu0
    %v810 = vadd.f32 %v613, %v809
    %v811 = vpop.f32.mrb[0].mxu0
    %v812 = vpop.f32.mrb[0].mxu0
    %v813 = vadd.f32 %v613, %v812
    %v814 = vpop.f32.mrb[0].mxu0
    %815 = vmatprep.mubr.bf16.mxu0 0
    %816 = vmatmul.mubr.bf16.gmra.mrb[0].mxu0 %v575
    %v817 = vpop.f32.mrb[0].mxu0
    %v818 = vadd.f32 %v613, %v817
    %v819 = vpop.f32.mrb[0].mxu0
    %v820 = vpop.f32.mrb[0].mxu0
    %v821 = vadd.f32 %v613, %v820
    %v822 = vpop.f32.mrb[0].mxu0
    %823 = vmatprep.mubr.bf16.mxu0 0
    %824 = vmatmul.mubr.bf16.gmra.mrb[0].mxu0 %v576
    %v825 = vpop.f32.mrb[0].mxu0
    %v826 = vadd.f32 %v613, %v825
    %v827 = vpop.f32.mrb[0].mxu0
    %v828 = vpop.f32.mrb[0].mxu0
    %v829 = vadd.f32 %v613, %v828
    %v830 = vpop.f32.mrb[0].mxu0
    %831 = vmatprep.mubr.bf16.mxu0 0
    %832 = vmatmul.mubr.bf16.gmra.mrb[0].mxu0 %v577
    %v833 = vpop.f32.mrb[0].mxu0
    %v834 = vadd.f32 %v613, %v833
    %v835 = vpop.f32.mrb[0].mxu0
    %v836 = vpop.f32.mrb[0].mxu0
    %v837 = vadd.f32 %v613, %v836
    %v838 = vpop.f32.mrb[0].mxu0
    %839 = vmatprep.mubr.bf16.mxu0 0
    %840 = vmatmul.mubr.bf16.gmra.mrb[0].mxu0 %v578
    %v841 = vpop.f32.mrb[0].mxu0
    %v842 = vadd.f32 %v613, %v841
    %v843 = vpop.f32.mrb[0].mxu0
    %v844 = vpop.f32.mrb[0].mxu0
    %v845 = vadd.f32 %v613, %v844
    %v846 = vpop.f32.mrb[0].mxu0
    %847 = vmatprep.mubr.bf16.mxu0 0
    %848 = vmatmul.mubr.bf16.gmra.mrb[0].mxu0 %v579
    %v849 = vpop.f32.mrb[0].mxu0
    %v850 = vadd.f32 %v613, %v849
    %v851 = vpop.f32.mrb[0].mxu0
    %v852 = vpop.f32.mrb[0].mxu0
    %v853 = vadd.f32 %v613, %v852
    %v854 = vpop.f32.mrb[0].mxu0
    %855 = vmatprep.mubr.bf16.mxu0 0
    %856 = vmatmul.mubr.bf16.gmra.mrb[0].mxu0 %v580
    %v857 = vpop.f32.mrb[0].mxu0
    %v858 = vadd.f32 %v613, %v857
    %v859 = vpop.f32.mrb[0].mxu0
    %v860 = vpop.f32.mrb[0].mxu0
    %v861 = vadd.f32 %v613, %v860
    %v862 = vpop.f32.mrb[0].mxu0
    %863 = vmatprep.mubr.bf16.mxu0 0
    %864 = vmatmul.mubr.bf16.gmra.mrb[0].mxu0 %v581
    %v865 = vpop.f32.mrb[0].mxu0
    %v866 = vadd.f32 %v613, %v865
    %v867 = vpop.f32.mrb[0].mxu0
    %v868 = vpop.f32.mrb[0].mxu0
    %v869 = vadd.f32 %v613, %v868
    %v870 = vpop.f32.mrb[0].mxu0
    %871 = vmatprep.mubr.bf16.mxu0 0
    %872 = vmatmul.mubr.bf16.gmra.mrb[0].mxu0 %v582
    %v873 = vpop.f32.mrb[0].mxu0
    %v874 = vadd.f32 %v613, %v873
    %v875 = vpop.f32.mrb[0].mxu0
    %v876 = vpop.f32.mrb[0].mxu0
    %v877 = vadd.f32 %v613, %v876
    %v878 = vpop.f32.mrb[0].mxu0
    %879 = vmatprep.mubr.bf16.mxu0 0
    %880 = vmatmul.mubr.bf16.gmra.mrb[0].mxu0 %v583
    %v881 = vpop.f32.mrb[0].mxu0
    %v882 = vadd.f32 %v613, %v881
    %v883 = vpop.f32.mrb[0].mxu0
    %v884 = vpop.f32.mrb[0].mxu0
    %v885 = vadd.f32 %v613, %v884
    %v886 = vpop.f32.mrb[0].mxu0
    %887 = vmatprep.mubr.bf16.mxu0 0
    %888 = vmatmul.mubr.bf16.gmra.mrb[0].mxu0 %v584
    %v889 = vpop.f32.mrb[0].mxu0
    %v890 = vadd.f32 %v613, %v889
    %v891 = vpop.f32.mrb[0].mxu0
    %v892 = vpop.f32.mrb[0].mxu0
    %v893 = vadd.f32 %v613, %v892
    %v894 = vpop.f32.mrb[0].mxu0
    %895 = vmatprep.mubr.bf16.mxu0 0
    %896 = vmatmul.mubr.bf16.gmra.mrb[0].mxu0 %v585
    %v897 = vpop.f32.mrb[0].mxu0
    %v898 = vadd.f32 %v613, %v897
    %v899 = vpop.f32.mrb[0].mxu0
    %v900 = vpop.f32.mrb[0].mxu0
    %v901 = vadd.f32 %v613, %v900
    %v902 = vpop.f32.mrb[0].mxu0
    %903 = vmatprep.mubr.bf16.mxu0 0
    %904 = vmatmul.mubr.bf16.gmra.mrb[0].mxu0 %v586
    %v905 = vpop.f32.mrb[0].mxu0
    %v906 = vadd.f32 %v613, %v905
    %v907 = vpop.f32.mrb[0].mxu0
    %v908 = vpop.f32.mrb[0].mxu0
    %v909 = vadd.f32 %v613, %v908
    %v910 = vpop.f32.mrb[0].mxu0
    %911 = vmatprep.mubr.bf16.mxu0 0
    %912 = vmatmul.mubr.bf16.gmra.mrb[0].mxu0 %v587
    %v913 = vpop.f32.mrb[0].mxu0
    %v914 = vadd.f32 %v613, %v913
    %v915 = vpop.f32.mrb[0].mxu0
    %v916 = vpop.f32.mrb[0].mxu0
    %v917 = vadd.f32 %v613, %v916
    %v918 = vpop.f32.mrb[0].mxu0
    %919 = vmatprep.mubr.bf16.mxu0 0
    %920 = vmatmul.mubr.bf16.gmra.mrb[0].mxu0 %v588
    %v921 = vpop.f32.mrb[0].mxu0
    %v922 = vadd.f32 %v613, %v921
    %v923 = vpop.f32.mrb[0].mxu0
    %v924 = vpop.f32.mrb[0].mxu0
    %v925 = vadd.f32 %v613, %v924
    %v926 = vpop.f32.mrb[0].mxu0
    %927 = vmatprep.mubr.bf16.mxu0 0
    %928 = vmatmul.mubr.bf16.gmra.mrb[0].mxu0 %v589
    %v929 = vpop.f32.mrb[0].mxu0
    %v930 = vadd.f32 %v613, %v929
    %v931 = vpop.f32.mrb[0].mxu0
    %v932 = vpop.f32.mrb[0].mxu0
    %v933 = vadd.f32 %v613, %v932
    %v934 = vpop.f32.mrb[0].mxu0
    %935 = vmatprep.mubr.bf16.mxu0 0
    %936 = vmatmul.mubr.bf16.gmra.mrb[0].mxu0 %v590
    %v937 = vpop.f32.mrb[0].mxu0
    %v938 = vadd.f32 %v613, %v937
    %v939 = vpop.f32.mrb[0].mxu0
    %v940 = vpop.f32.mrb[0].mxu0
    %v941 = vadd.f32 %v613, %v940
    %v942 = vpop.f32.mrb[0].mxu0
    %943 = vmatprep.mubr.bf16.mxu0 0
    %944 = vmatmul.mubr.bf16.gmra.mrb[0].mxu0 %v591
    %v945 = vpop.f32.mrb[0].mxu0
    %v946 = vadd.f32 %v613, %v945
    %v947 = vpop.f32.mrb[0].mxu0
    %v948 = vpop.f32.mrb[0].mxu0
    %v949 = vadd.f32 %v613, %v948
    %v950 = vpop.f32.mrb[0].mxu0
    %951 = vdwg.mxu0
    %v952 = vmax.f32 %v698, 0.0
    %v953 = vmax.f32 %v701, 0.0
    %v954 = vmax.f32 %v706, 0.0
    %v955 = vmax.f32 %v709, 0.0
    %v956 = vmax.f32 %v714, 0.0
    %v957 = vmax.f32 %v717, 0.0
    %v958 = vmax.f32 %v722, 0.0
    %v959 = vmax.f32 %v725, 0.0
    %v960 = vmax.f32 %v730, 0.0
    %v961 = vmax.f32 %v733, 0.0
    %v962 = vmax.f32 %v738, 0.0
    %v963 = vmax.f32 %v741, 0.0
    %v964 = vmax.f32 %v746, 0.0
    %v965 = vmax.f32 %v749, 0.0
    %v966 = vmax.f32 %v754, 0.0
    %v967 = vmax.f32 %v757, 0.0
    %v968 = vmax.f32 %v762, 0.0
    %v969 = vmax.f32 %v765, 0.0
    %v970 = vmax.f32 %v770, 0.0
    %v971 = vmax.f32 %v773, 0.0
    %v972 = vmax.f32 %v778, 0.0
    %v973 = vmax.f32 %v781, 0.0
    %v974 = vmax.f32 %v786, 0.0
    %v975 = vmax.f32 %v789, 0.0
    %v976 = vmax.f32 %v794, 0.0
    %v977 = vmax.f32 %v797, 0.0
    %v978 = vmax.f32 %v802, 0.0
    %v979 = vmax.f32 %v805, 0.0
    %v980 = vmax.f32 %v810, 0.0
    %v981 = vmax.f32 %v813, 0.0
    %v982 = vmax.f32 %v818, 0.0
    %v983 = vmax.f32 %v821, 0.0
    %v984 = vmax.f32 %v826, 0.0
    %v985 = vmax.f32 %v829, 0.0
    %v986 = vmax.f32 %v834, 0.0
    %v987 = vmax.f32 %v837, 0.0
    %v988 = vmax.f32 %v842, 0.0
    %v989 = vmax.f32 %v845, 0.0
    %v990 = vmax.f32 %v850, 0.0
    %v991 = vmax.f32 %v853, 0.0
    %v992 = vmax.f32 %v858, 0.0
    %v993 = vmax.f32 %v861, 0.0
    %v994 = vmax.f32 %v866, 0.0
    %v995 = vmax.f32 %v869, 0.0
    %v996 = vmax.f32 %v874, 0.0
    %v997 = vmax.f32 %v877, 0.0
    %v998 = vmax.f32 %v882, 0.0
    %v999 = vmax.f32 %v885, 0.0
    %v1000 = vmax.f32 %v890, 0.0
    %v1001 = vmax.f32 %v893, 0.0
    %v1002 = vmax.f32 %v898, 0.0
    %v1003 = vmax.f32 %v901, 0.0
    %v1004 = vmax.f32 %v906, 0.0
    %v1005 = vmax.f32 %v909, 0.0
    %v1006 = vmax.f32 %v914, 0.0
    %v1007 = vmax.f32 %v917, 0.0
    %v1008 = vmax.f32 %v922, 0.0
    %v1009 = vmax.f32 %v925, 0.0
    %v1010 = vmax.f32 %v930, 0.0
    %v1011 = vmax.f32 %v933, 0.0
    %v1012 = vmax.f32 %v938, 0.0
    %v1013 = vmax.f32 %v941, 0.0
    %v1014 = vmax.f32 %v946, 0.0
    %v1015 = vmax.f32 %v949, 0.0
    %v1016 = vpack.c.bf16 %v953, %v952
    %v1017 = vpack.c.bf16 %v955, %v954
    %v1018 = vpack.c.bf16 %v957, %v956
    %v1019 = vpack.c.bf16 %v959, %v958
    %v1020 = vpack.c.bf16 %v961, %v960
    %v1021 = vpack.c.bf16 %v963, %v962
    %v1022 = vpack.c.bf16 %v965, %v964
    %v1023 = vpack.c.bf16 %v967, %v966
    %v1024 = vpack.c.bf16 %v969, %v968
    %v1025 = vpack.c.bf16 %v971, %v970
    %v1026 = vpack.c.bf16 %v973, %v972
    %v1027 = vpack.c.bf16 %v975, %v974
    %v1028 = vpack.c.bf16 %v977, %v976
    %v1029 = vpack.c.bf16 %v979, %v978
    %v1030 = vpack.c.bf16 %v981, %v980
    %v1031 = vpack.c.bf16 %v983, %v982
    %v1032 = vpack.c.bf16 %v985, %v984
    %v1033 = vpack.c.bf16 %v987, %v986
    %v1034 = vpack.c.bf16 %v989, %v988
    %v1035 = vpack.c.bf16 %v991, %v990
    %v1036 = vpack.c.bf16 %v993, %v992
    %v1037 = vpack.c.bf16 %v995, %v994
    %v1038 = vpack.c.bf16 %v997, %v996
    %v1039 = vpack.c.bf16 %v999, %v998
    %v1040 = vpack.c.bf16 %v1001, %v1000
    %v1041 = vpack.c.bf16 %v1003, %v1002
    %v1042 = vpack.c.bf16 %v1005, %v1004
    %v1043 = vpack.c.bf16 %v1007, %v1006
    %v1044 = vpack.c.bf16 %v1009, %v1008
    %v1045 = vpack.c.bf16 %v1011, %v1010
    %v1046 = vpack.c.bf16 %v1013, %v1012
    %v1047 = vpack.c.bf16 %v1015, %v1014
    %v1048 = vld [vmem:[%s5] sm:$0xf]
    %v1049 = vld [vmem:[%s5 + $0x4] sm:$0xf]
    %v1050 = vld [vmem:[%s5 + $0x8] sm:$0xf]
    %v1051 = vld [vmem:[%s5 + $0xc] sm:$0xf]
    %v1052 = vld [vmem:[%s5 + $0x10] sm:$0xf]
    %v1053 = vld [vmem:[%s5 + $0x14] sm:$0xf]
    %v1054 = vld [vmem:[%s5 + $0x18] sm:$0xf]
    %v1055 = vld [vmem:[%s5 + $0x1c] sm:$0xf]
    %v1056 = vld [vmem:[%s5 + $0x20] sm:$0xf]
    %v1057 = vld [vmem:[%s5 + $0x24] sm:$0xf]
    %v1058 = vld [vmem:[%s5 + $0x28] sm:$0xf]
    %v1059 = vld [vmem:[%s5 + $0x2c] sm:$0xf]
    %v1060 = vld [vmem:[%s5 + $0x30] sm:$0xf]
    %v1061 = vld [vmem:[%s5 + $0x34] sm:$0xf]
    %v1062 = vld [vmem:[%s5 + $0x38] sm:$0xf]
    %v1063 = vld [vmem:[%s5 + $0x3c] sm:$0xf]
    %v1064 = vld [vmem:[%s6] sm:$0x1]
    %v1066 = vlaneseq
    %v1067 = vshrl.u32 %v1066, 7
    %v1068 = vsub.s32 0, %v1067
    %v1069 = vrot.slane %v1064, %v1068
    %v1087 = vunpack.c.l.b16 %v1048
    %v1088 = vunpack.c.l.b16 %v1049
    %v1089 = vunpack.c.l.b16 %v1050
    %v1090 = vunpack.c.l.b16 %v1051
    %v1091 = vunpack.c.l.b16 %v1052
    %v1092 = vunpack.c.l.b16 %v1053
    %v1093 = vunpack.c.l.b16 %v1054
    %v1094 = vunpack.c.l.b16 %v1055
    %v1095 = vunpack.c.l.b16 %v1056
    %v1096 = vunpack.c.l.b16 %v1057
    %v1097 = vunpack.c.l.b16 %v1058
    %v1098 = vunpack.c.l.b16 %v1059
    %v1099 = vunpack.c.l.b16 %v1060
    %v1100 = vunpack.c.l.b16 %v1061
    %v1101 = vunpack.c.l.b16 %v1062
    %v1102 = vunpack.c.l.b16 %v1063
    %v1103 = vpack.c.b16 %v1088, %v1087
    %v1104 = vpack.c.b16 %v1090, %v1089
    %v1105 = vpack.c.b16 %v1092, %v1091
    %v1106 = vpack.c.b16 %v1094, %v1093
    %v1107 = vpack.c.b16 %v1096, %v1095
    %v1108 = vpack.c.b16 %v1098, %v1097
    %v1109 = vpack.c.b16 %v1100, %v1099
    %v1110 = vpack.c.b16 %v1102, %v1101
    %1119 = vmatprep.subr.bf16.mxu0 0
    %1120 = vmatpush1.bf16.msra.mxu0 %v1103
    %1121 = vmatprep.subr.bf16.mxu0 0
    %1122 = vmatpush1.bf16.msra.mxu0 %v1104
    %1123 = vmatprep.subr.bf16.mxu0 0
    %1124 = vmatpush1.bf16.msra.mxu0 %v1105
    %1125 = vmatprep.subr.bf16.mxu0 0
    %1126 = vmatpush1.bf16.msra.mxu0 %v1106
    %1127 = vmatprep.subr.bf16.mxu0 0
    %1128 = vmatpush1.bf16.msra.mxu0 %v1107
    %1129 = vmatprep.subr.bf16.mxu0 0
    %1130 = vmatpush1.bf16.msra.mxu0 %v1108
    %1131 = vmatprep.subr.bf16.mxu0 0
    %1132 = vmatpush1.bf16.msra.mxu0 %v1109
    %1133 = vmatprep.subr.bf16.mxu0 0
    %1134 = vmatpush1.bf16.msra.mxu0 %v1110
    %1135 = vmatprep.subr.bf16.mxu0 0
    %1136 = vmatpush1.bf16.msra.mxu0 0
    %1137 = vmatprep.subr.bf16.mxu0 0
    %1138 = vmatpush1.bf16.msra.mxu0 0
    %1139 = vmatprep.subr.bf16.mxu0 0
    %1140 = vmatpush1.bf16.msra.mxu0 0
    %1141 = vmatprep.subr.bf16.mxu0 0
    %1142 = vmatpush1.bf16.msra.mxu0 0
    %1143 = vmatprep.subr.bf16.mxu0 0
    %1144 = vmatpush1.bf16.msra.mxu0 0
    %1145 = vmatprep.subr.bf16.mxu0 0
    %1146 = vmatpush1.bf16.msra.mxu0 0
    %1147 = vmatprep.subr.bf16.mxu0 0
    %1148 = vmatpush1.bf16.msra.mxu0 0
    %1149 = vmatprep.subr.bf16.mxu0 0
    %1150 = vmatpush1.bf16.msra.mxu0 0
    %1151 = vmatprep.mubr.bf16.mxu0 0
    %1152 = vmatmul.mubr.bf16.gmra.mrb[0].mxu0 %v1016
    %v1153 = vpop.f32.mrb[0].mxu0
    %v1154 = vadd.f32 %v1069, %v1153
    %v1155 = vpop.f32.mrb[0].mxu0
    %v1156 = vpop.f32.mrb[0].mxu0
    %v1157 = vadd.f32 %v1069, %v1156
    %v1158 = vpop.f32.mrb[0].mxu0
    %1159 = vmatprep.mubr.bf16.mxu0 0
    %1160 = vmatmul.mubr.bf16.gmra.mrb[0].mxu0 %v1017
    %v1161 = vpop.f32.mrb[0].mxu0
    %v1162 = vadd.f32 %v1069, %v1161
    %v1163 = vpop.f32.mrb[0].mxu0
    %v1164 = vpop.f32.mrb[0].mxu0
    %v1165 = vadd.f32 %v1069, %v1164
    %v1166 = vpop.f32.mrb[0].mxu0
    %1167 = vmatprep.mubr.bf16.mxu0 0
    %1168 = vmatmul.mubr.bf16.gmra.mrb[0].mxu0 %v1018
    %v1169 = vpop.f32.mrb[0].mxu0
    %v1170 = vadd.f32 %v1069, %v1169
    %v1171 = vpop.f32.mrb[0].mxu0
    %v1172 = vpop.f32.mrb[0].mxu0
    %v1173 = vadd.f32 %v1069, %v1172
    %v1174 = vpop.f32.mrb[0].mxu0
    %1175 = vmatprep.mubr.bf16.mxu0 0
    %1176 = vmatmul.mubr.bf16.gmra.mrb[0].mxu0 %v1019
    %v1177 = vpop.f32.mrb[0].mxu0
    %v1178 = vadd.f32 %v1069, %v1177
    %v1179 = vpop.f32.mrb[0].mxu0
    %v1180 = vpop.f32.mrb[0].mxu0
    %v1181 = vadd.f32 %v1069, %v1180
    %v1182 = vpop.f32.mrb[0].mxu0
    %1183 = vmatprep.mubr.bf16.mxu0 0
    %1184 = vmatmul.mubr.bf16.gmra.mrb[0].mxu0 %v1020
    %v1185 = vpop.f32.mrb[0].mxu0
    %v1186 = vadd.f32 %v1069, %v1185
    %v1187 = vpop.f32.mrb[0].mxu0
    %v1188 = vpop.f32.mrb[0].mxu0
    %v1189 = vadd.f32 %v1069, %v1188
    %v1190 = vpop.f32.mrb[0].mxu0
    %1191 = vmatprep.mubr.bf16.mxu0 0
    %1192 = vmatmul.mubr.bf16.gmra.mrb[0].mxu0 %v1021
    %v1193 = vpop.f32.mrb[0].mxu0
    %v1194 = vadd.f32 %v1069, %v1193
    %v1195 = vpop.f32.mrb[0].mxu0
    %v1196 = vpop.f32.mrb[0].mxu0
    %v1197 = vadd.f32 %v1069, %v1196
    %v1198 = vpop.f32.mrb[0].mxu0
    %1199 = vmatprep.mubr.bf16.mxu0 0
    %1200 = vmatmul.mubr.bf16.gmra.mrb[0].mxu0 %v1022
    %v1201 = vpop.f32.mrb[0].mxu0
    %v1202 = vadd.f32 %v1069, %v1201
    %v1203 = vpop.f32.mrb[0].mxu0
    %v1204 = vpop.f32.mrb[0].mxu0
    %v1205 = vadd.f32 %v1069, %v1204
    %v1206 = vpop.f32.mrb[0].mxu0
    %1207 = vmatprep.mubr.bf16.mxu0 0
    %1208 = vmatmul.mubr.bf16.gmra.mrb[0].mxu0 %v1023
    %v1209 = vpop.f32.mrb[0].mxu0
    %v1210 = vadd.f32 %v1069, %v1209
    %v1211 = vpop.f32.mrb[0].mxu0
    %v1212 = vpop.f32.mrb[0].mxu0
    %v1213 = vadd.f32 %v1069, %v1212
    %v1214 = vpop.f32.mrb[0].mxu0
    %1215 = vmatprep.mubr.bf16.mxu0 0
    %1216 = vmatmul.mubr.bf16.gmra.mrb[0].mxu0 %v1024
    %v1217 = vpop.f32.mrb[0].mxu0
    %v1218 = vadd.f32 %v1069, %v1217
    %v1219 = vpop.f32.mrb[0].mxu0
    %v1220 = vpop.f32.mrb[0].mxu0
    %v1221 = vadd.f32 %v1069, %v1220
    %v1222 = vpop.f32.mrb[0].mxu0
    %1223 = vmatprep.mubr.bf16.mxu0 0
    %1224 = vmatmul.mubr.bf16.gmra.mrb[0].mxu0 %v1025
    %v1225 = vpop.f32.mrb[0].mxu0
    %v1226 = vadd.f32 %v1069, %v1225
    %v1227 = vpop.f32.mrb[0].mxu0
    %v1228 = vpop.f32.mrb[0].mxu0
    %v1229 = vadd.f32 %v1069, %v1228
    %v1230 = vpop.f32.mrb[0].mxu0
    %1231 = vmatprep.mubr.bf16.mxu0 0
    %1232 = vmatmul.mubr.bf16.gmra.mrb[0].mxu0 %v1026
    %v1233 = vpop.f32.mrb[0].mxu0
    %v1234 = vadd.f32 %v1069, %v1233
    %v1235 = vpop.f32.mrb[0].mxu0
    %v1236 = vpop.f32.mrb[0].mxu0
    %v1237 = vadd.f32 %v1069, %v1236
    %v1238 = vpop.f32.mrb[0].mxu0
    %1239 = vmatprep.mubr.bf16.mxu0 0
    %1240 = vmatmul.mubr.bf16.gmra.mrb[0].mxu0 %v1027
    %v1241 = vpop.f32.mrb[0].mxu0
    %v1242 = vadd.f32 %v1069, %v1241
    %v1243 = vpop.f32.mrb[0].mxu0
    %v1244 = vpop.f32.mrb[0].mxu0
    %v1245 = vadd.f32 %v1069, %v1244
    %v1246 = vpop.f32.mrb[0].mxu0
    %1247 = vmatprep.mubr.bf16.mxu0 0
    %1248 = vmatmul.mubr.bf16.gmra.mrb[0].mxu0 %v1028
    %v1249 = vpop.f32.mrb[0].mxu0
    %v1250 = vadd.f32 %v1069, %v1249
    %v1251 = vpop.f32.mrb[0].mxu0
    %v1252 = vpop.f32.mrb[0].mxu0
    %v1253 = vadd.f32 %v1069, %v1252
    %v1254 = vpop.f32.mrb[0].mxu0
    %1255 = vmatprep.mubr.bf16.mxu0 0
    %1256 = vmatmul.mubr.bf16.gmra.mrb[0].mxu0 %v1029
    %v1257 = vpop.f32.mrb[0].mxu0
    %v1258 = vadd.f32 %v1069, %v1257
    %v1259 = vpop.f32.mrb[0].mxu0
    %v1260 = vpop.f32.mrb[0].mxu0
    %v1261 = vadd.f32 %v1069, %v1260
    %v1262 = vpop.f32.mrb[0].mxu0
    %1263 = vmatprep.mubr.bf16.mxu0 0
    %1264 = vmatmul.mubr.bf16.gmra.mrb[0].mxu0 %v1030
    %v1265 = vpop.f32.mrb[0].mxu0
    %v1266 = vadd.f32 %v1069, %v1265
    %v1267 = vpop.f32.mrb[0].mxu0
    %v1268 = vpop.f32.mrb[0].mxu0
    %v1269 = vadd.f32 %v1069, %v1268
    %v1270 = vpop.f32.mrb[0].mxu0
    %1271 = vmatprep.mubr.bf16.mxu0 0
    %1272 = vmatmul.mubr.bf16.gmra.mrb[0].mxu0 %v1031
    %v1273 = vpop.f32.mrb[0].mxu0
    %v1274 = vadd.f32 %v1069, %v1273
    %v1275 = vpop.f32.mrb[0].mxu0
    %v1276 = vpop.f32.mrb[0].mxu0
    %v1277 = vadd.f32 %v1069, %v1276
    %v1278 = vpop.f32.mrb[0].mxu0
    %1279 = vmatprep.mubr.bf16.mxu0 0
    %1280 = vmatmul.mubr.bf16.gmra.mrb[0].mxu0 %v1032
    %v1281 = vpop.f32.mrb[0].mxu0
    %v1282 = vadd.f32 %v1069, %v1281
    %v1283 = vpop.f32.mrb[0].mxu0
    %v1284 = vpop.f32.mrb[0].mxu0
    %v1285 = vadd.f32 %v1069, %v1284
    %v1286 = vpop.f32.mrb[0].mxu0
    %1287 = vmatprep.mubr.bf16.mxu0 0
    %1288 = vmatmul.mubr.bf16.gmra.mrb[0].mxu0 %v1033
    %v1289 = vpop.f32.mrb[0].mxu0
    %v1290 = vadd.f32 %v1069, %v1289
    %v1291 = vpop.f32.mrb[0].mxu0
    %v1292 = vpop.f32.mrb[0].mxu0
    %v1293 = vadd.f32 %v1069, %v1292
    %v1294 = vpop.f32.mrb[0].mxu0
    %1295 = vmatprep.mubr.bf16.mxu0 0
    %1296 = vmatmul.mubr.bf16.gmra.mrb[0].mxu0 %v1034
    %v1297 = vpop.f32.mrb[0].mxu0
    %v1298 = vadd.f32 %v1069, %v1297
    %v1299 = vpop.f32.mrb[0].mxu0
    %v1300 = vpop.f32.mrb[0].mxu0
    %v1301 = vadd.f32 %v1069, %v1300
    %v1302 = vpop.f32.mrb[0].mxu0
    %1303 = vmatprep.mubr.bf16.mxu0 0
    %1304 = vmatmul.mubr.bf16.gmra.mrb[0].mxu0 %v1035
    %v1305 = vpop.f32.mrb[0].mxu0
    %v1306 = vadd.f32 %v1069, %v1305
    %v1307 = vpop.f32.mrb[0].mxu0
    %v1308 = vpop.f32.mrb[0].mxu0
    %v1309 = vadd.f32 %v1069, %v1308
    %v1310 = vpop.f32.mrb[0].mxu0
    %1311 = vmatprep.mubr.bf16.mxu0 0
    %1312 = vmatmul.mubr.bf16.gmra.mrb[0].mxu0 %v1036
    %v1313 = vpop.f32.mrb[0].mxu0
    %v1314 = vadd.f32 %v1069, %v1313
    %v1315 = vpop.f32.mrb[0].mxu0
    %v1316 = vpop.f32.mrb[0].mxu0
    %v1317 = vadd.f32 %v1069, %v1316
    %v1318 = vpop.f32.mrb[0].mxu0
    %1319 = vmatprep.mubr.bf16.mxu0 0
    %1320 = vmatmul.mubr.bf16.gmra.mrb[0].mxu0 %v1037
    %v1321 = vpop.f32.mrb[0].mxu0
    %v1322 = vadd.f32 %v1069, %v1321
    %v1323 = vpop.f32.mrb[0].mxu0
    %v1324 = vpop.f32.mrb[0].mxu0
    %v1325 = vadd.f32 %v1069, %v1324
    %v1326 = vpop.f32.mrb[0].mxu0
    %1327 = vmatprep.mubr.bf16.mxu0 0
    %1328 = vmatmul.mubr.bf16.gmra.mrb[0].mxu0 %v1038
    %v1329 = vpop.f32.mrb[0].mxu0
    %v1330 = vadd.f32 %v1069, %v1329
    %v1331 = vpop.f32.mrb[0].mxu0
    %v1332 = vpop.f32.mrb[0].mxu0
    %v1333 = vadd.f32 %v1069, %v1332
    %v1334 = vpop.f32.mrb[0].mxu0
    %1335 = vmatprep.mubr.bf16.mxu0 0
    %1336 = vmatmul.mubr.bf16.gmra.mrb[0].mxu0 %v1039
    %v1337 = vpop.f32.mrb[0].mxu0
    %v1338 = vadd.f32 %v1069, %v1337
    %v1339 = vpop.f32.mrb[0].mxu0
    %v1340 = vpop.f32.mrb[0].mxu0
    %v1341 = vadd.f32 %v1069, %v1340
    %v1342 = vpop.f32.mrb[0].mxu0
    %1343 = vmatprep.mubr.bf16.mxu0 0
    %1344 = vmatmul.mubr.bf16.gmra.mrb[0].mxu0 %v1040
    %v1345 = vpop.f32.mrb[0].mxu0
    %v1346 = vadd.f32 %v1069, %v1345
    %v1347 = vpop.f32.mrb[0].mxu0
    %v1348 = vpop.f32.mrb[0].mxu0
    %v1349 = vadd.f32 %v1069, %v1348
    %v1350 = vpop.f32.mrb[0].mxu0
    %1351 = vmatprep.mubr.bf16.mxu0 0
    %1352 = vmatmul.mubr.bf16.gmra.mrb[0].mxu0 %v1041
    %v1353 = vpop.f32.mrb[0].mxu0
    %v1354 = vadd.f32 %v1069, %v1353
    %v1355 = vpop.f32.mrb[0].mxu0
    %v1356 = vpop.f32.mrb[0].mxu0
    %v1357 = vadd.f32 %v1069, %v1356
    %v1358 = vpop.f32.mrb[0].mxu0
    %1359 = vmatprep.mubr.bf16.mxu0 0
    %1360 = vmatmul.mubr.bf16.gmra.mrb[0].mxu0 %v1042
    %v1361 = vpop.f32.mrb[0].mxu0
    %v1362 = vadd.f32 %v1069, %v1361
    %v1363 = vpop.f32.mrb[0].mxu0
    %v1364 = vpop.f32.mrb[0].mxu0
    %v1365 = vadd.f32 %v1069, %v1364
    %v1366 = vpop.f32.mrb[0].mxu0
    %1367 = vmatprep.mubr.bf16.mxu0 0
    %1368 = vmatmul.mubr.bf16.gmra.mrb[0].mxu0 %v1043
    %v1369 = vpop.f32.mrb[0].mxu0
    %v1370 = vadd.f32 %v1069, %v1369
    %v1371 = vpop.f32.mrb[0].mxu0
    %v1372 = vpop.f32.mrb[0].mxu0
    %v1373 = vadd.f32 %v1069, %v1372
    %v1374 = vpop.f32.mrb[0].mxu0
    %1375 = vmatprep.mubr.bf16.mxu0 0
    %1376 = vmatmul.mubr.bf16.gmra.mrb[0].mxu0 %v1044
    %v1377 = vpop.f32.mrb[0].mxu0
    %v1378 = vadd.f32 %v1069, %v1377
    %v1379 = vpop.f32.mrb[0].mxu0
    %v1380 = vpop.f32.mrb[0].mxu0
    %v1381 = vadd.f32 %v1069, %v1380
    %v1382 = vpop.f32.mrb[0].mxu0
    %1383 = vmatprep.mubr.bf16.mxu0 0
    %1384 = vmatmul.mubr.bf16.gmra.mrb[0].mxu0 %v1045
    %v1385 = vpop.f32.mrb[0].mxu0
    %v1386 = vadd.f32 %v1069, %v1385
    %v1387 = vpop.f32.mrb[0].mxu0
    %v1388 = vpop.f32.mrb[0].mxu0
    %v1389 = vadd.f32 %v1069, %v1388
    %v1390 = vpop.f32.mrb[0].mxu0
    %1391 = vmatprep.mubr.bf16.mxu0 0
    %1392 = vmatmul.mubr.bf16.gmra.mrb[0].mxu0 %v1046
    %v1393 = vpop.f32.mrb[0].mxu0
    %v1394 = vadd.f32 %v1069, %v1393
    %v1395 = vpop.f32.mrb[0].mxu0
    %v1396 = vpop.f32.mrb[0].mxu0
    %v1397 = vadd.f32 %v1069, %v1396
    %v1398 = vpop.f32.mrb[0].mxu0
    %1399 = vmatprep.mubr.bf16.mxu0 0
    %1400 = vmatmul.mubr.bf16.gmra.mrb[0].mxu0 %v1047
    %v1401 = vpop.f32.mrb[0].mxu0
    %v1402 = vadd.f32 %v1069, %v1401
    %v1403 = vpop.f32.mrb[0].mxu0
    %v1404 = vpop.f32.mrb[0].mxu0
    %v1405 = vadd.f32 %v1069, %v1404
    %v1406 = vpop.f32.mrb[0].mxu0
    %1407 = vdwg.mxu0
    %v1408 = vmax.f32 %v1154, 0.0
    %v1409 = vmax.f32 %v1157, 0.0
    %v1410 = vmax.f32 %v1162, 0.0
    %v1411 = vmax.f32 %v1165, 0.0
    %v1412 = vmax.f32 %v1170, 0.0
    %v1413 = vmax.f32 %v1173, 0.0
    %v1414 = vmax.f32 %v1178, 0.0
    %v1415 = vmax.f32 %v1181, 0.0
    %v1416 = vmax.f32 %v1186, 0.0
    %v1417 = vmax.f32 %v1189, 0.0
    %v1418 = vmax.f32 %v1194, 0.0
    %v1419 = vmax.f32 %v1197, 0.0
    %v1420 = vmax.f32 %v1202, 0.0
    %v1421 = vmax.f32 %v1205, 0.0
    %v1422 = vmax.f32 %v1210, 0.0
    %v1423 = vmax.f32 %v1213, 0.0
    %v1424 = vmax.f32 %v1218, 0.0
    %v1425 = vmax.f32 %v1221, 0.0
    %v1426 = vmax.f32 %v1226, 0.0
    %v1427 = vmax.f32 %v1229, 0.0
    %v1428 = vmax.f32 %v1234, 0.0
    %v1429 = vmax.f32 %v1237, 0.0
    %v1430 = vmax.f32 %v1242, 0.0
    %v1431 = vmax.f32 %v1245, 0.0
    %v1432 = vmax.f32 %v1250, 0.0
    %v1433 = vmax.f32 %v1253, 0.0
    %v1434 = vmax.f32 %v1258, 0.0
    %v1435 = vmax.f32 %v1261, 0.0
    %v1436 = vmax.f32 %v1266, 0.0
    %v1437 = vmax.f32 %v1269, 0.0
    %v1438 = vmax.f32 %v1274, 0.0
    %v1439 = vmax.f32 %v1277, 0.0
    %v1440 = vmax.f32 %v1282, 0.0
    %v1441 = vmax.f32 %v1285, 0.0
    %v1442 = vmax.f32 %v1290, 0.0
    %v1443 = vmax.f32 %v1293, 0.0
    %v1444 = vmax.f32 %v1298, 0.0
    %v1445 = vmax.f32 %v1301, 0.0
    %v1446 = vmax.f32 %v1306, 0.0
    %v1447 = vmax.f32 %v1309, 0.0
    %v1448 = vmax.f32 %v1314, 0.0
    %v1449 = vmax.f32 %v1317, 0.0
    %v1450 = vmax.f32 %v1322, 0.0
    %v1451 = vmax.f32 %v1325, 0.0
    %v1452 = vmax.f32 %v1330, 0.0
    %v1453 = vmax.f32 %v1333, 0.0
    %v1454 = vmax.f32 %v1338, 0.0
    %v1455 = vmax.f32 %v1341, 0.0
    %v1456 = vmax.f32 %v1346, 0.0
    %v1457 = vmax.f32 %v1349, 0.0
    %v1458 = vmax.f32 %v1354, 0.0
    %v1459 = vmax.f32 %v1357, 0.0
    %v1460 = vmax.f32 %v1362, 0.0
    %v1461 = vmax.f32 %v1365, 0.0
    %v1462 = vmax.f32 %v1370, 0.0
    %v1463 = vmax.f32 %v1373, 0.0
    %v1464 = vmax.f32 %v1378, 0.0
    %v1465 = vmax.f32 %v1381, 0.0
    %v1466 = vmax.f32 %v1386, 0.0
    %v1467 = vmax.f32 %v1389, 0.0
    %v1468 = vmax.f32 %v1394, 0.0
    %v1469 = vmax.f32 %v1397, 0.0
    %v1470 = vmax.f32 %v1402, 0.0
    %v1471 = vmax.f32 %v1405, 0.0
    %v1472 = vpack.c.bf16 %v1409, %v1408
    %v1473 = vpack.c.bf16 %v1411, %v1410
    %v1474 = vpack.c.bf16 %v1413, %v1412
    %v1475 = vpack.c.bf16 %v1415, %v1414
    %v1476 = vpack.c.bf16 %v1417, %v1416
    %v1477 = vpack.c.bf16 %v1419, %v1418
    %v1478 = vpack.c.bf16 %v1421, %v1420
    %v1479 = vpack.c.bf16 %v1423, %v1422
    %v1480 = vpack.c.bf16 %v1425, %v1424
    %v1481 = vpack.c.bf16 %v1427, %v1426
    %v1482 = vpack.c.bf16 %v1429, %v1428
    %v1483 = vpack.c.bf16 %v1431, %v1430
    %v1484 = vpack.c.bf16 %v1433, %v1432
    %v1485 = vpack.c.bf16 %v1435, %v1434
    %v1486 = vpack.c.bf16 %v1437, %v1436
    %v1487 = vpack.c.bf16 %v1439, %v1438
    %v1488 = vpack.c.bf16 %v1441, %v1440
    %v1489 = vpack.c.bf16 %v1443, %v1442
    %v1490 = vpack.c.bf16 %v1445, %v1444
    %v1491 = vpack.c.bf16 %v1447, %v1446
    %v1492 = vpack.c.bf16 %v1449, %v1448
    %v1493 = vpack.c.bf16 %v1451, %v1450
    %v1494 = vpack.c.bf16 %v1453, %v1452
    %v1495 = vpack.c.bf16 %v1455, %v1454
    %v1496 = vpack.c.bf16 %v1457, %v1456
    %v1497 = vpack.c.bf16 %v1459, %v1458
    %v1498 = vpack.c.bf16 %v1461, %v1460
    %v1499 = vpack.c.bf16 %v1463, %v1462
    %v1500 = vpack.c.bf16 %v1465, %v1464
    %v1501 = vpack.c.bf16 %v1467, %v1466
    %v1502 = vpack.c.bf16 %v1469, %v1468
    %v1503 = vpack.c.bf16 %v1471, %v1470
    %v1504 = vld [vmem:[%s7] sm:$0xf]
    %v1505 = vld [vmem:[%s7 + $0x4] sm:$0xf]
    %v1506 = vld [vmem:[%s7 + $0x8] sm:$0xf]
    %v1507 = vld [vmem:[%s7 + $0xc] sm:$0xf]
    %v1508 = vld [vmem:[%s7 + $0x10] sm:$0xf]
    %v1509 = vld [vmem:[%s7 + $0x14] sm:$0xf]
    %v1510 = vld [vmem:[%s7 + $0x18] sm:$0xf]
    %v1511 = vld [vmem:[%s7 + $0x1c] sm:$0xf]
    %v1512 = vld [vmem:[%s7 + $0x20] sm:$0xf]
    %v1513 = vld [vmem:[%s7 + $0x24] sm:$0xf]
    %v1514 = vld [vmem:[%s7 + $0x28] sm:$0xf]
    %v1515 = vld [vmem:[%s7 + $0x2c] sm:$0xf]
    %v1516 = vld [vmem:[%s7 + $0x30] sm:$0xf]
    %v1517 = vld [vmem:[%s7 + $0x34] sm:$0xf]
    %v1518 = vld [vmem:[%s7 + $0x38] sm:$0xf]
    %v1519 = vld [vmem:[%s7 + $0x3c] sm:$0xf]
    %v1520 = vld [vmem:[%s8] sm:$0x1]
    %v1522 = vlaneseq
    %v1523 = vshrl.u32 %v1522, 7
    %v1524 = vsub.s32 0, %v1523
    %v1525 = vrot.slane %v1520, %v1524
    %v1543 = vunpack.c.l.b16 %v1504
    %v1544 = vunpack.c.l.b16 %v1505
    %v1545 = vunpack.c.l.b16 %v1506
    %v1546 = vunpack.c.l.b16 %v1507
    %v1547 = vunpack.c.l.b16 %v1508
    %v1548 = vunpack.c.l.b16 %v1509
    %v1549 = vunpack.c.l.b16 %v1510
    %v1550 = vunpack.c.l.b16 %v1511
    %v1551 = vunpack.c.l.b16 %v1512
    %v1552 = vunpack.c.l.b16 %v1513
    %v1553 = vunpack.c.l.b16 %v1514
    %v1554 = vunpack.c.l.b16 %v1515
    %v1555 = vunpack.c.l.b16 %v1516
    %v1556 = vunpack.c.l.b16 %v1517
    %v1557 = vunpack.c.l.b16 %v1518
    %v1558 = vunpack.c.l.b16 %v1519
    %v1559 = vpack.c.b16 %v1544, %v1543
    %v1560 = vpack.c.b16 %v1546, %v1545
    %v1561 = vpack.c.b16 %v1548, %v1547
    %v1562 = vpack.c.b16 %v1550, %v1549
    %v1563 = vpack.c.b16 %v1552, %v1551
    %v1564 = vpack.c.b16 %v1554, %v1553
    %v1565 = vpack.c.b16 %v1556, %v1555
    %v1566 = vpack.c.b16 %v1558, %v1557
    %1575 = vmatprep.subr.bf16.mxu0 0
    %1576 = vmatpush1.bf16.msra.mxu0 %v1559
    %1577 = vmatprep.subr.bf16.mxu0 0
    %1578 = vmatpush1.bf16.msra.mxu0 %v1560
    %1579 = vmatprep.subr.bf16.mxu0 0
    %1580 = vmatpush1.bf16.msra.mxu0 %v1561
    %1581 = vmatprep.subr.bf16.mxu0 0
    %1582 = vmatpush1.bf16.msra.mxu0 %v1562
    %1583 = vmatprep.subr.bf16.mxu0 0
    %1584 = vmatpush1.bf16.msra.mxu0 %v1563
    %1585 = vmatprep.subr.bf16.mxu0 0
    %1586 = vmatpush1.bf16.msra.mxu0 %v1564
    %1587 = vmatprep.subr.bf16.mxu0 0
    %1588 = vmatpush1.bf16.msra.mxu0 %v1565
    %1589 = vmatprep.subr.bf16.mxu0 0
    %1590 = vmatpush1.bf16.msra.mxu0 %v1566
    %1591 = vmatprep.subr.bf16.mxu0 0
    %1592 = vmatpush1.bf16.msra.mxu0 0
    %1593 = vmatprep.subr.bf16.mxu0 0
    %1594 = vmatpush1.bf16.msra.mxu0 0
    %1595 = vmatprep.subr.bf16.mxu0 0
    %1596 = vmatpush1.bf16.msra.mxu0 0
    %1597 = vmatprep.subr.bf16.mxu0 0
    %1598 = vmatpush1.bf16.msra.mxu0 0
    %1599 = vmatprep.subr.bf16.mxu0 0
    %1600 = vmatpush1.bf16.msra.mxu0 0
    %1601 = vmatprep.subr.bf16.mxu0 0
    %1602 = vmatpush1.bf16.msra.mxu0 0
    %1603 = vmatprep.subr.bf16.mxu0 0
    %1604 = vmatpush1.bf16.msra.mxu0 0
    %1605 = vmatprep.subr.bf16.mxu0 0
    %1606 = vmatpush1.bf16.msra.mxu0 0
    %1607 = vmatprep.mubr.bf16.mxu0 0
    %1608 = vmatmul.mubr.bf16.gmra.mrb[0].mxu0 %v1472
    %v1609 = vpop.f32.mrb[0].mxu0
    %v1610 = vadd.f32 %v1525, %v1609
    %v1611 = vpop.f32.mrb[0].mxu0
    %v1612 = vpop.f32.mrb[0].mxu0
    %v1613 = vadd.f32 %v1525, %v1612
    %v1614 = vpop.f32.mrb[0].mxu0
    %1615 = vmatprep.mubr.bf16.mxu0 0
    %1616 = vmatmul.mubr.bf16.gmra.mrb[0].mxu0 %v1473
    %v1617 = vpop.f32.mrb[0].mxu0
    %v1618 = vadd.f32 %v1525, %v1617
    %v1619 = vpop.f32.mrb[0].mxu0
    %v1620 = vpop.f32.mrb[0].mxu0
    %v1621 = vadd.f32 %v1525, %v1620
    %v1622 = vpop.f32.mrb[0].mxu0
    %1623 = vmatprep.mubr.bf16.mxu0 0
    %1624 = vmatmul.mubr.bf16.gmra.mrb[0].mxu0 %v1474
    %v1625 = vpop.f32.mrb[0].mxu0
    %v1626 = vadd.f32 %v1525, %v1625
    %v1627 = vpop.f32.mrb[0].mxu0
    %v1628 = vpop.f32.mrb[0].mxu0
    %v1629 = vadd.f32 %v1525, %v1628
    %v1630 = vpop.f32.mrb[0].mxu0
    %1631 = vmatprep.mubr.bf16.mxu0 0
    %1632 = vmatmul.mubr.bf16.gmra.mrb[0].mxu0 %v1475
    %v1633 = vpop.f32.mrb[0].mxu0
    %v1634 = vadd.f32 %v1525, %v1633
    %v1635 = vpop.f32.mrb[0].mxu0
    %v1636 = vpop.f32.mrb[0].mxu0
    %v1637 = vadd.f32 %v1525, %v1636
    %v1638 = vpop.f32.mrb[0].mxu0
    %1639 = vmatprep.mubr.bf16.mxu0 0
    %1640 = vmatmul.mubr.bf16.gmra.mrb[0].mxu0 %v1476
    %v1641 = vpop.f32.mrb[0].mxu0
    %v1642 = vadd.f32 %v1525, %v1641
    %v1643 = vpop.f32.mrb[0].mxu0
    %v1644 = vpop.f32.mrb[0].mxu0
    %v1645 = vadd.f32 %v1525, %v1644
    %v1646 = vpop.f32.mrb[0].mxu0
    %1647 = vmatprep.mubr.bf16.mxu0 0
    %1648 = vmatmul.mubr.bf16.gmra.mrb[0].mxu0 %v1477
    %v1649 = vpop.f32.mrb[0].mxu0
    %v1650 = vadd.f32 %v1525, %v1649
    %v1651 = vpop.f32.mrb[0].mxu0
    %v1652 = vpop.f32.mrb[0].mxu0
    %v1653 = vadd.f32 %v1525, %v1652
    %v1654 = vpop.f32.mrb[0].mxu0
    %1655 = vmatprep.mubr.bf16.mxu0 0
    %1656 = vmatmul.mubr.bf16.gmra.mrb[0].mxu0 %v1478
    %v1657 = vpop.f32.mrb[0].mxu0
    %v1658 = vadd.f32 %v1525, %v1657
    %v1659 = vpop.f32.mrb[0].mxu0
    %v1660 = vpop.f32.mrb[0].mxu0
    %v1661 = vadd.f32 %v1525, %v1660
    %v1662 = vpop.f32.mrb[0].mxu0
    %1663 = vmatprep.mubr.bf16.mxu0 0
    %1664 = vmatmul.mubr.bf16.gmra.mrb[0].mxu0 %v1479
    %v1665 = vpop.f32.mrb[0].mxu0
    %v1666 = vadd.f32 %v1525, %v1665
    %v1667 = vpop.f32.mrb[0].mxu0
    %v1668 = vpop.f32.mrb[0].mxu0
    %v1669 = vadd.f32 %v1525, %v1668
    %v1670 = vpop.f32.mrb[0].mxu0
    %1671 = vmatprep.mubr.bf16.mxu0 0
    %1672 = vmatmul.mubr.bf16.gmra.mrb[0].mxu0 %v1480
    %v1673 = vpop.f32.mrb[0].mxu0
    %v1674 = vadd.f32 %v1525, %v1673
    %v1675 = vpop.f32.mrb[0].mxu0
    %v1676 = vpop.f32.mrb[0].mxu0
    %v1677 = vadd.f32 %v1525, %v1676
    %v1678 = vpop.f32.mrb[0].mxu0
    %1679 = vmatprep.mubr.bf16.mxu0 0
    %1680 = vmatmul.mubr.bf16.gmra.mrb[0].mxu0 %v1481
    %v1681 = vpop.f32.mrb[0].mxu0
    %v1682 = vadd.f32 %v1525, %v1681
    %v1683 = vpop.f32.mrb[0].mxu0
    %v1684 = vpop.f32.mrb[0].mxu0
    %v1685 = vadd.f32 %v1525, %v1684
    %v1686 = vpop.f32.mrb[0].mxu0
    %1687 = vmatprep.mubr.bf16.mxu0 0
    %1688 = vmatmul.mubr.bf16.gmra.mrb[0].mxu0 %v1482
    %v1689 = vpop.f32.mrb[0].mxu0
    %v1690 = vadd.f32 %v1525, %v1689
    %v1691 = vpop.f32.mrb[0].mxu0
    %v1692 = vpop.f32.mrb[0].mxu0
    %v1693 = vadd.f32 %v1525, %v1692
    %v1694 = vpop.f32.mrb[0].mxu0
    %1695 = vmatprep.mubr.bf16.mxu0 0
    %1696 = vmatmul.mubr.bf16.gmra.mrb[0].mxu0 %v1483
    %v1697 = vpop.f32.mrb[0].mxu0
    %v1698 = vadd.f32 %v1525, %v1697
    %v1699 = vpop.f32.mrb[0].mxu0
    %v1700 = vpop.f32.mrb[0].mxu0
    %v1701 = vadd.f32 %v1525, %v1700
    %v1702 = vpop.f32.mrb[0].mxu0
    %1703 = vmatprep.mubr.bf16.mxu0 0
    %1704 = vmatmul.mubr.bf16.gmra.mrb[0].mxu0 %v1484
    %v1705 = vpop.f32.mrb[0].mxu0
    %v1706 = vadd.f32 %v1525, %v1705
    %v1707 = vpop.f32.mrb[0].mxu0
    %v1708 = vpop.f32.mrb[0].mxu0
    %v1709 = vadd.f32 %v1525, %v1708
    %v1710 = vpop.f32.mrb[0].mxu0
    %1711 = vmatprep.mubr.bf16.mxu0 0
    %1712 = vmatmul.mubr.bf16.gmra.mrb[0].mxu0 %v1485
    %v1713 = vpop.f32.mrb[0].mxu0
    %v1714 = vadd.f32 %v1525, %v1713
    %v1715 = vpop.f32.mrb[0].mxu0
    %v1716 = vpop.f32.mrb[0].mxu0
    %v1717 = vadd.f32 %v1525, %v1716
    %v1718 = vpop.f32.mrb[0].mxu0
    %1719 = vmatprep.mubr.bf16.mxu0 0
    %1720 = vmatmul.mubr.bf16.gmra.mrb[0].mxu0 %v1486
    %v1721 = vpop.f32.mrb[0].mxu0
    %v1722 = vadd.f32 %v1525, %v1721
    %v1723 = vpop.f32.mrb[0].mxu0
    %v1724 = vpop.f32.mrb[0].mxu0
    %v1725 = vadd.f32 %v1525, %v1724
    %v1726 = vpop.f32.mrb[0].mxu0
    %1727 = vmatprep.mubr.bf16.mxu0 0
    %1728 = vmatmul.mubr.bf16.gmra.mrb[0].mxu0 %v1487
    %v1729 = vpop.f32.mrb[0].mxu0
    %v1730 = vadd.f32 %v1525, %v1729
    %v1731 = vpop.f32.mrb[0].mxu0
    %v1732 = vpop.f32.mrb[0].mxu0
    %v1733 = vadd.f32 %v1525, %v1732
    %v1734 = vpop.f32.mrb[0].mxu0
    %1735 = vmatprep.mubr.bf16.mxu0 0
    %1736 = vmatmul.mubr.bf16.gmra.mrb[0].mxu0 %v1488
    %v1737 = vpop.f32.mrb[0].mxu0
    %v1738 = vadd.f32 %v1525, %v1737
    %v1739 = vpop.f32.mrb[0].mxu0
    %v1740 = vpop.f32.mrb[0].mxu0
    %v1741 = vadd.f32 %v1525, %v1740
    %v1742 = vpop.f32.mrb[0].mxu0
    %1743 = vmatprep.mubr.bf16.mxu0 0
    %1744 = vmatmul.mubr.bf16.gmra.mrb[0].mxu0 %v1489
    %v1745 = vpop.f32.mrb[0].mxu0
    %v1746 = vadd.f32 %v1525, %v1745
    %v1747 = vpop.f32.mrb[0].mxu0
    %v1748 = vpop.f32.mrb[0].mxu0
    %v1749 = vadd.f32 %v1525, %v1748
    %v1750 = vpop.f32.mrb[0].mxu0
    %1751 = vmatprep.mubr.bf16.mxu0 0
    %1752 = vmatmul.mubr.bf16.gmra.mrb[0].mxu0 %v1490
    %v1753 = vpop.f32.mrb[0].mxu0
    %v1754 = vadd.f32 %v1525, %v1753
    %v1755 = vpop.f32.mrb[0].mxu0
    %v1756 = vpop.f32.mrb[0].mxu0
    %v1757 = vadd.f32 %v1525, %v1756
    %v1758 = vpop.f32.mrb[0].mxu0
    %1759 = vmatprep.mubr.bf16.mxu0 0
    %1760 = vmatmul.mubr.bf16.gmra.mrb[0].mxu0 %v1491
    %v1761 = vpop.f32.mrb[0].mxu0
    %v1762 = vadd.f32 %v1525, %v1761
    %v1763 = vpop.f32.mrb[0].mxu0
    %v1764 = vpop.f32.mrb[0].mxu0
    %v1765 = vadd.f32 %v1525, %v1764
    %v1766 = vpop.f32.mrb[0].mxu0
    %1767 = vmatprep.mubr.bf16.mxu0 0
    %1768 = vmatmul.mubr.bf16.gmra.mrb[0].mxu0 %v1492
    %v1769 = vpop.f32.mrb[0].mxu0
    %v1770 = vadd.f32 %v1525, %v1769
    %v1771 = vpop.f32.mrb[0].mxu0
    %v1772 = vpop.f32.mrb[0].mxu0
    %v1773 = vadd.f32 %v1525, %v1772
    %v1774 = vpop.f32.mrb[0].mxu0
    %1775 = vmatprep.mubr.bf16.mxu0 0
    %1776 = vmatmul.mubr.bf16.gmra.mrb[0].mxu0 %v1493
    %v1777 = vpop.f32.mrb[0].mxu0
    %v1778 = vadd.f32 %v1525, %v1777
    %v1779 = vpop.f32.mrb[0].mxu0
    %v1780 = vpop.f32.mrb[0].mxu0
    %v1781 = vadd.f32 %v1525, %v1780
    %v1782 = vpop.f32.mrb[0].mxu0
    %1783 = vmatprep.mubr.bf16.mxu0 0
    %1784 = vmatmul.mubr.bf16.gmra.mrb[0].mxu0 %v1494
    %v1785 = vpop.f32.mrb[0].mxu0
    %v1786 = vadd.f32 %v1525, %v1785
    %v1787 = vpop.f32.mrb[0].mxu0
    %v1788 = vpop.f32.mrb[0].mxu0
    %v1789 = vadd.f32 %v1525, %v1788
    %v1790 = vpop.f32.mrb[0].mxu0
    %1791 = vmatprep.mubr.bf16.mxu0 0
    %1792 = vmatmul.mubr.bf16.gmra.mrb[0].mxu0 %v1495
    %v1793 = vpop.f32.mrb[0].mxu0
    %v1794 = vadd.f32 %v1525, %v1793
    %v1795 = vpop.f32.mrb[0].mxu0
    %v1796 = vpop.f32.mrb[0].mxu0
    %v1797 = vadd.f32 %v1525, %v1796
    %v1798 = vpop.f32.mrb[0].mxu0
    %1799 = vmatprep.mubr.bf16.mxu0 0
    %1800 = vmatmul.mubr.bf16.gmra.mrb[0].mxu0 %v1496
    %v1801 = vpop.f32.mrb[0].mxu0
    %v1802 = vadd.f32 %v1525, %v1801
    %v1803 = vpop.f32.mrb[0].mxu0
    %v1804 = vpop.f32.mrb[0].mxu0
    %v1805 = vadd.f32 %v1525, %v1804
    %v1806 = vpop.f32.mrb[0].mxu0
    %1807 = vmatprep.mubr.bf16.mxu0 0
    %1808 = vmatmul.mubr.bf16.gmra.mrb[0].mxu0 %v1497
    %v1809 = vpop.f32.mrb[0].mxu0
    %v1810 = vadd.f32 %v1525, %v1809
    %v1811 = vpop.f32.mrb[0].mxu0
    %v1812 = vpop.f32.mrb[0].mxu0
    %v1813 = vadd.f32 %v1525, %v1812
    %v1814 = vpop.f32.mrb[0].mxu0
    %1815 = vmatprep.mubr.bf16.mxu0 0
    %1816 = vmatmul.mubr.bf16.gmra.mrb[0].mxu0 %v1498
    %v1817 = vpop.f32.mrb[0].mxu0
    %v1818 = vadd.f32 %v1525, %v1817
    %v1819 = vpop.f32.mrb[0].mxu0
    %v1820 = vpop.f32.mrb[0].mxu0
    %v1821 = vadd.f32 %v1525, %v1820
    %v1822 = vpop.f32.mrb[0].mxu0
    %1823 = vmatprep.mubr.bf16.mxu0 0
    %1824 = vmatmul.mubr.bf16.gmra.mrb[0].mxu0 %v1499
    %v1825 = vpop.f32.mrb[0].mxu0
    %v1826 = vadd.f32 %v1525, %v1825
    %v1827 = vpop.f32.mrb[0].mxu0
    %v1828 = vpop.f32.mrb[0].mxu0
    %v1829 = vadd.f32 %v1525, %v1828
    %v1830 = vpop.f32.mrb[0].mxu0
    %1831 = vmatprep.mubr.bf16.mxu0 0
    %1832 = vmatmul.mubr.bf16.gmra.mrb[0].mxu0 %v1500
    %v1833 = vpop.f32.mrb[0].mxu0
    %v1834 = vadd.f32 %v1525, %v1833
    %v1835 = vpop.f32.mrb[0].mxu0
    %v1836 = vpop.f32.mrb[0].mxu0
    %v1837 = vadd.f32 %v1525, %v1836
    %v1838 = vpop.f32.mrb[0].mxu0
    %1839 = vmatprep.mubr.bf16.mxu0 0
    %1840 = vmatmul.mubr.bf16.gmra.mrb[0].mxu0 %v1501
    %v1841 = vpop.f32.mrb[0].mxu0
    %v1842 = vadd.f32 %v1525, %v1841
    %v1843 = vpop.f32.mrb[0].mxu0
    %v1844 = vpop.f32.mrb[0].mxu0
    %v1845 = vadd.f32 %v1525, %v1844
    %v1846 = vpop.f32.mrb[0].mxu0
    %1847 = vmatprep.mubr.bf16.mxu0 0
    %1848 = vmatmul.mubr.bf16.gmra.mrb[0].mxu0 %v1502
    %v1849 = vpop.f32.mrb[0].mxu0
    %v1850 = vadd.f32 %v1525, %v1849
    %v1851 = vpop.f32.mrb[0].mxu0
    %v1852 = vpop.f32.mrb[0].mxu0
    %v1853 = vadd.f32 %v1525, %v1852
    %v1854 = vpop.f32.mrb[0].mxu0
    %1855 = vmatprep.mubr.bf16.mxu0 0
    %1856 = vmatmul.mubr.bf16.gmra.mrb[0].mxu0 %v1503
    %v1857 = vpop.f32.mrb[0].mxu0
    %v1858 = vadd.f32 %v1525, %v1857
    %v1859 = vpop.f32.mrb[0].mxu0
    %v1860 = vpop.f32.mrb[0].mxu0
    %v1861 = vadd.f32 %v1525, %v1860
    %v1862 = vpop.f32.mrb[0].mxu0
    %1863 = vdwg.mxu0
    %v1864 = vmax.f32 %v1610, 0.0
    %v1865 = vmax.f32 %v1613, 0.0
    %v1866 = vmax.f32 %v1618, 0.0
    %v1867 = vmax.f32 %v1621, 0.0
    %v1868 = vmax.f32 %v1626, 0.0
    %v1869 = vmax.f32 %v1629, 0.0
    %v1870 = vmax.f32 %v1634, 0.0
    %v1871 = vmax.f32 %v1637, 0.0
    %v1872 = vmax.f32 %v1642, 0.0
    %v1873 = vmax.f32 %v1645, 0.0
    %v1874 = vmax.f32 %v1650, 0.0
    %v1875 = vmax.f32 %v1653, 0.0
    %v1876 = vmax.f32 %v1658, 0.0
    %v1877 = vmax.f32 %v1661, 0.0
    %v1878 = vmax.f32 %v1666, 0.0
    %v1879 = vmax.f32 %v1669, 0.0
    %v1880 = vmax.f32 %v1674, 0.0
    %v1881 = vmax.f32 %v1677, 0.0
    %v1882 = vmax.f32 %v1682, 0.0
    %v1883 = vmax.f32 %v1685, 0.0
    %v1884 = vmax.f32 %v1690, 0.0
    %v1885 = vmax.f32 %v1693, 0.0
    %v1886 = vmax.f32 %v1698, 0.0
    %v1887 = vmax.f32 %v1701, 0.0
    %v1888 = vmax.f32 %v1706, 0.0
    %v1889 = vmax.f32 %v1709, 0.0
    %v1890 = vmax.f32 %v1714, 0.0
    %v1891 = vmax.f32 %v1717, 0.0
    %v1892 = vmax.f32 %v1722, 0.0
    %v1893 = vmax.f32 %v1725, 0.0
    %v1894 = vmax.f32 %v1730, 0.0
    %v1895 = vmax.f32 %v1733, 0.0
    %v1896 = vmax.f32 %v1738, 0.0
    %v1897 = vmax.f32 %v1741, 0.0
    %v1898 = vmax.f32 %v1746, 0.0
    %v1899 = vmax.f32 %v1749, 0.0
    %v1900 = vmax.f32 %v1754, 0.0
    %v1901 = vmax.f32 %v1757, 0.0
    %v1902 = vmax.f32 %v1762, 0.0
    %v1903 = vmax.f32 %v1765, 0.0
    %v1904 = vmax.f32 %v1770, 0.0
    %v1905 = vmax.f32 %v1773, 0.0
    %v1906 = vmax.f32 %v1778, 0.0
    %v1907 = vmax.f32 %v1781, 0.0
    %v1908 = vmax.f32 %v1786, 0.0
    %v1909 = vmax.f32 %v1789, 0.0
    %v1910 = vmax.f32 %v1794, 0.0
    %v1911 = vmax.f32 %v1797, 0.0
    %v1912 = vmax.f32 %v1802, 0.0
    %v1913 = vmax.f32 %v1805, 0.0
    %v1914 = vmax.f32 %v1810, 0.0
    %v1915 = vmax.f32 %v1813, 0.0
    %v1916 = vmax.f32 %v1818, 0.0
    %v1917 = vmax.f32 %v1821, 0.0
    %v1918 = vmax.f32 %v1826, 0.0
    %v1919 = vmax.f32 %v1829, 0.0
    %v1920 = vmax.f32 %v1834, 0.0
    %v1921 = vmax.f32 %v1837, 0.0
    %v1922 = vmax.f32 %v1842, 0.0
    %v1923 = vmax.f32 %v1845, 0.0
    %v1924 = vmax.f32 %v1850, 0.0
    %v1925 = vmax.f32 %v1853, 0.0
    %v1926 = vmax.f32 %v1858, 0.0
    %v1927 = vmax.f32 %v1861, 0.0
    %v1928 = vpack.c.bf16 %v1865, %v1864
    %v1929 = vpack.c.bf16 %v1867, %v1866
    %v1930 = vpack.c.bf16 %v1869, %v1868
    %v1931 = vpack.c.bf16 %v1871, %v1870
    %v1932 = vpack.c.bf16 %v1873, %v1872
    %v1933 = vpack.c.bf16 %v1875, %v1874
    %v1934 = vpack.c.bf16 %v1877, %v1876
    %v1935 = vpack.c.bf16 %v1879, %v1878
    %v1936 = vpack.c.bf16 %v1881, %v1880
    %v1937 = vpack.c.bf16 %v1883, %v1882
    %v1938 = vpack.c.bf16 %v1885, %v1884
    %v1939 = vpack.c.bf16 %v1887, %v1886
    %v1940 = vpack.c.bf16 %v1889, %v1888
    %v1941 = vpack.c.bf16 %v1891, %v1890
    %v1942 = vpack.c.bf16 %v1893, %v1892
    %v1943 = vpack.c.bf16 %v1895, %v1894
    %v1944 = vpack.c.bf16 %v1897, %v1896
    %v1945 = vpack.c.bf16 %v1899, %v1898
    %v1946 = vpack.c.bf16 %v1901, %v1900
    %v1947 = vpack.c.bf16 %v1903, %v1902
    %v1948 = vpack.c.bf16 %v1905, %v1904
    %v1949 = vpack.c.bf16 %v1907, %v1906
    %v1950 = vpack.c.bf16 %v1909, %v1908
    %v1951 = vpack.c.bf16 %v1911, %v1910
    %v1952 = vpack.c.bf16 %v1913, %v1912
    %v1953 = vpack.c.bf16 %v1915, %v1914
    %v1954 = vpack.c.bf16 %v1917, %v1916
    %v1955 = vpack.c.bf16 %v1919, %v1918
    %v1956 = vpack.c.bf16 %v1921, %v1920
    %v1957 = vpack.c.bf16 %v1923, %v1922
    %v1958 = vpack.c.bf16 %v1925, %v1924
    %v1959 = vpack.c.bf16 %v1927, %v1926
    %v1960 = vld [vmem:[%s9] sm:$0xf]
    %v1961 = vld [vmem:[%s9 + $0x4] sm:$0xf]
    %v1962 = vld [vmem:[%s9 + $0x8] sm:$0xf]
    %v1963 = vld [vmem:[%s9 + $0xc] sm:$0xf]
    %v1964 = vld [vmem:[%s9 + $0x10] sm:$0xf]
    %v1965 = vld [vmem:[%s9 + $0x14] sm:$0xf]
    %v1966 = vld [vmem:[%s9 + $0x18] sm:$0xf]
    %v1967 = vld [vmem:[%s9 + $0x1c] sm:$0xf]
    %v1968 = vld [vmem:[%s9 + $0x20] sm:$0xf]
    %v1969 = vld [vmem:[%s9 + $0x24] sm:$0xf]
    %v1970 = vld [vmem:[%s9 + $0x28] sm:$0xf]
    %v1971 = vld [vmem:[%s9 + $0x2c] sm:$0xf]
    %v1972 = vld [vmem:[%s9 + $0x30] sm:$0xf]
    %v1973 = vld [vmem:[%s9 + $0x34] sm:$0xf]
    %v1974 = vld [vmem:[%s9 + $0x38] sm:$0xf]
    %v1975 = vld [vmem:[%s9 + $0x3c] sm:$0xf]
    %v1976 = vld [vmem:[%s10] sm:$0x1]
    %v1978 = vlaneseq
    %v1979 = vshrl.u32 %v1978, 7
    %v1980 = vsub.s32 0, %v1979
    %v1981 = vrot.slane %v1976, %v1980
    %v1999 = vunpack.c.l.b16 %v1960
    %v2000 = vunpack.c.l.b16 %v1961
    %v2001 = vunpack.c.l.b16 %v1962
    %v2002 = vunpack.c.l.b16 %v1963
    %v2003 = vunpack.c.l.b16 %v1964
    %v2004 = vunpack.c.l.b16 %v1965
    %v2005 = vunpack.c.l.b16 %v1966
    %v2006 = vunpack.c.l.b16 %v1967
    %v2007 = vunpack.c.l.b16 %v1968
    %v2008 = vunpack.c.l.b16 %v1969
    %v2009 = vunpack.c.l.b16 %v1970
    %v2010 = vunpack.c.l.b16 %v1971
    %v2011 = vunpack.c.l.b16 %v1972
    %v2012 = vunpack.c.l.b16 %v1973
    %v2013 = vunpack.c.l.b16 %v1974
    %v2014 = vunpack.c.l.b16 %v1975
    %v2015 = vpack.c.b16 %v2000, %v1999
    %v2016 = vpack.c.b16 %v2002, %v2001
    %v2017 = vpack.c.b16 %v2004, %v2003
    %v2018 = vpack.c.b16 %v2006, %v2005
    %v2019 = vpack.c.b16 %v2008, %v2007
    %v2020 = vpack.c.b16 %v2010, %v2009
    %v2021 = vpack.c.b16 %v2012, %v2011
    %v2022 = vpack.c.b16 %v2014, %v2013
    %2031 = vmatprep.subr.bf16.mxu0 0
    %2032 = vmatpush1.bf16.msra.mxu0 %v2015
    %2033 = vmatprep.subr.bf16.mxu0 0
    %2034 = vmatpush1.bf16.msra.mxu0 %v2016
    %2035 = vmatprep.subr.bf16.mxu0 0
    %2036 = vmatpush1.bf16.msra.mxu0 %v2017
    %2037 = vmatprep.subr.bf16.mxu0 0
    %2038 = vmatpush1.bf16.msra.mxu0 %v2018
    %2039 = vmatprep.subr.bf16.mxu0 0
    %2040 = vmatpush1.bf16.msra.mxu0 %v2019
    %2041 = vmatprep.subr.bf16.mxu0 0
    %2042 = vmatpush1.bf16.msra.mxu0 %v2020
    %2043 = vmatprep.subr.bf16.mxu0 0
    %2044 = vmatpush1.bf16.msra.mxu0 %v2021
    %2045 = vmatprep.subr.bf16.mxu0 0
    %2046 = vmatpush1.bf16.msra.mxu0 %v2022
    %2047 = vmatprep.subr.bf16.mxu0 0
    %2048 = vmatpush1.bf16.msra.mxu0 0
    %2049 = vmatprep.subr.bf16.mxu0 0
    %2050 = vmatpush1.bf16.msra.mxu0 0
    %2051 = vmatprep.subr.bf16.mxu0 0
    %2052 = vmatpush1.bf16.msra.mxu0 0
    %2053 = vmatprep.subr.bf16.mxu0 0
    %2054 = vmatpush1.bf16.msra.mxu0 0
    %2055 = vmatprep.subr.bf16.mxu0 0
    %2056 = vmatpush1.bf16.msra.mxu0 0
    %2057 = vmatprep.subr.bf16.mxu0 0
    %2058 = vmatpush1.bf16.msra.mxu0 0
    %2059 = vmatprep.subr.bf16.mxu0 0
    %2060 = vmatpush1.bf16.msra.mxu0 0
    %2061 = vmatprep.subr.bf16.mxu0 0
    %2062 = vmatpush1.bf16.msra.mxu0 0
    %2063 = vmatprep.mubr.bf16.mxu0 0
    %2064 = vmatmul.mubr.bf16.gmra.mrb[0].mxu0 %v1928
    %v2065 = vpop.f32.mrb[0].mxu0
    %v2066 = vadd.f32 %v1981, %v2065
    %v2067 = vpop.f32.mrb[0].mxu0
    %v2068 = vpop.f32.mrb[0].mxu0
    %v2069 = vadd.f32 %v1981, %v2068
    %v2070 = vpop.f32.mrb[0].mxu0
    %2071 = vmatprep.mubr.bf16.mxu0 0
    %2072 = vmatmul.mubr.bf16.gmra.mrb[0].mxu0 %v1929
    %v2073 = vpop.f32.mrb[0].mxu0
    %v2074 = vadd.f32 %v1981, %v2073
    %v2075 = vpop.f32.mrb[0].mxu0
    %v2076 = vpop.f32.mrb[0].mxu0
    %v2077 = vadd.f32 %v1981, %v2076
    %v2078 = vpop.f32.mrb[0].mxu0
    %2079 = vmatprep.mubr.bf16.mxu0 0
    %2080 = vmatmul.mubr.bf16.gmra.mrb[0].mxu0 %v1930
    %v2081 = vpop.f32.mrb[0].mxu0
    %v2082 = vadd.f32 %v1981, %v2081
    %v2083 = vpop.f32.mrb[0].mxu0
    %v2084 = vpop.f32.mrb[0].mxu0
    %v2085 = vadd.f32 %v1981, %v2084
    %v2086 = vpop.f32.mrb[0].mxu0
    %2087 = vmatprep.mubr.bf16.mxu0 0
    %2088 = vmatmul.mubr.bf16.gmra.mrb[0].mxu0 %v1931
    %v2089 = vpop.f32.mrb[0].mxu0
    %v2090 = vadd.f32 %v1981, %v2089
    %v2091 = vpop.f32.mrb[0].mxu0
    %v2092 = vpop.f32.mrb[0].mxu0
    %v2093 = vadd.f32 %v1981, %v2092
    %v2094 = vpop.f32.mrb[0].mxu0
    %2095 = vmatprep.mubr.bf16.mxu0 0
    %2096 = vmatmul.mubr.bf16.gmra.mrb[0].mxu0 %v1932
    %v2097 = vpop.f32.mrb[0].mxu0
    %v2098 = vadd.f32 %v1981, %v2097
    %v2099 = vpop.f32.mrb[0].mxu0
    %v2100 = vpop.f32.mrb[0].mxu0
    %v2101 = vadd.f32 %v1981, %v2100
    %v2102 = vpop.f32.mrb[0].mxu0
    %2103 = vmatprep.mubr.bf16.mxu0 0
    %2104 = vmatmul.mubr.bf16.gmra.mrb[0].mxu0 %v1933
    %v2105 = vpop.f32.mrb[0].mxu0
    %v2106 = vadd.f32 %v1981, %v2105
    %v2107 = vpop.f32.mrb[0].mxu0
    %v2108 = vpop.f32.mrb[0].mxu0
    %v2109 = vadd.f32 %v1981, %v2108
    %v2110 = vpop.f32.mrb[0].mxu0
    %2111 = vmatprep.mubr.bf16.mxu0 0
    %2112 = vmatmul.mubr.bf16.gmra.mrb[0].mxu0 %v1934
    %v2113 = vpop.f32.mrb[0].mxu0
    %v2114 = vadd.f32 %v1981, %v2113
    %v2115 = vpop.f32.mrb[0].mxu0
    %v2116 = vpop.f32.mrb[0].mxu0
    %v2117 = vadd.f32 %v1981, %v2116
    %v2118 = vpop.f32.mrb[0].mxu0
    %2119 = vmatprep.mubr.bf16.mxu0 0
    %2120 = vmatmul.mubr.bf16.gmra.mrb[0].mxu0 %v1935
    %v2121 = vpop.f32.mrb[0].mxu0
    %v2122 = vadd.f32 %v1981, %v2121
    %v2123 = vpop.f32.mrb[0].mxu0
    %v2124 = vpop.f32.mrb[0].mxu0
    %v2125 = vadd.f32 %v1981, %v2124
    %v2126 = vpop.f32.mrb[0].mxu0
    %2127 = vmatprep.mubr.bf16.mxu0 0
    %2128 = vmatmul.mubr.bf16.gmra.mrb[0].mxu0 %v1936
    %v2129 = vpop.f32.mrb[0].mxu0
    %v2130 = vadd.f32 %v1981, %v2129
    %v2131 = vpop.f32.mrb[0].mxu0
    %v2132 = vpop.f32.mrb[0].mxu0
    %v2133 = vadd.f32 %v1981, %v2132
    %v2134 = vpop.f32.mrb[0].mxu0
    %2135 = vmatprep.mubr.bf16.mxu0 0
    %2136 = vmatmul.mubr.bf16.gmra.mrb[0].mxu0 %v1937
    %v2137 = vpop.f32.mrb[0].mxu0
    %v2138 = vadd.f32 %v1981, %v2137
    %v2139 = vpop.f32.mrb[0].mxu0
    %v2140 = vpop.f32.mrb[0].mxu0
    %v2141 = vadd.f32 %v1981, %v2140
    %v2142 = vpop.f32.mrb[0].mxu0
    %2143 = vmatprep.mubr.bf16.mxu0 0
    %2144 = vmatmul.mubr.bf16.gmra.mrb[0].mxu0 %v1938
    %v2145 = vpop.f32.mrb[0].mxu0
    %v2146 = vadd.f32 %v1981, %v2145
    %v2147 = vpop.f32.mrb[0].mxu0
    %v2148 = vpop.f32.mrb[0].mxu0
    %v2149 = vadd.f32 %v1981, %v2148
    %v2150 = vpop.f32.mrb[0].mxu0
    %2151 = vmatprep.mubr.bf16.mxu0 0
    %2152 = vmatmul.mubr.bf16.gmra.mrb[0].mxu0 %v1939
    %v2153 = vpop.f32.mrb[0].mxu0
    %v2154 = vadd.f32 %v1981, %v2153
    %v2155 = vpop.f32.mrb[0].mxu0
    %v2156 = vpop.f32.mrb[0].mxu0
    %v2157 = vadd.f32 %v1981, %v2156
    %v2158 = vpop.f32.mrb[0].mxu0
    %2159 = vmatprep.mubr.bf16.mxu0 0
    %2160 = vmatmul.mubr.bf16.gmra.mrb[0].mxu0 %v1940
    %v2161 = vpop.f32.mrb[0].mxu0
    %v2162 = vadd.f32 %v1981, %v2161
    %v2163 = vpop.f32.mrb[0].mxu0
    %v2164 = vpop.f32.mrb[0].mxu0
    %v2165 = vadd.f32 %v1981, %v2164
    %v2166 = vpop.f32.mrb[0].mxu0
    %2167 = vmatprep.mubr.bf16.mxu0 0
    %2168 = vmatmul.mubr.bf16.gmra.mrb[0].mxu0 %v1941
    %v2169 = vpop.f32.mrb[0].mxu0
    %v2170 = vadd.f32 %v1981, %v2169
    %v2171 = vpop.f32.mrb[0].mxu0
    %v2172 = vpop.f32.mrb[0].mxu0
    %v2173 = vadd.f32 %v1981, %v2172
    %v2174 = vpop.f32.mrb[0].mxu0
    %2175 = vmatprep.mubr.bf16.mxu0 0
    %2176 = vmatmul.mubr.bf16.gmra.mrb[0].mxu0 %v1942
    %v2177 = vpop.f32.mrb[0].mxu0
    %v2178 = vadd.f32 %v1981, %v2177
    %v2179 = vpop.f32.mrb[0].mxu0
    %v2180 = vpop.f32.mrb[0].mxu0
    %v2181 = vadd.f32 %v1981, %v2180
    %v2182 = vpop.f32.mrb[0].mxu0
    %2183 = vmatprep.mubr.bf16.mxu0 0
    %2184 = vmatmul.mubr.bf16.gmra.mrb[0].mxu0 %v1943
    %v2185 = vpop.f32.mrb[0].mxu0
    %v2186 = vadd.f32 %v1981, %v2185
    %v2187 = vpop.f32.mrb[0].mxu0
    %v2188 = vpop.f32.mrb[0].mxu0
    %v2189 = vadd.f32 %v1981, %v2188
    %v2190 = vpop.f32.mrb[0].mxu0
    %2191 = vmatprep.mubr.bf16.mxu0 0
    %2192 = vmatmul.mubr.bf16.gmra.mrb[0].mxu0 %v1944
    %v2193 = vpop.f32.mrb[0].mxu0
    %v2194 = vadd.f32 %v1981, %v2193
    %v2195 = vpop.f32.mrb[0].mxu0
    %v2196 = vpop.f32.mrb[0].mxu0
    %v2197 = vadd.f32 %v1981, %v2196
    %v2198 = vpop.f32.mrb[0].mxu0
    %2199 = vmatprep.mubr.bf16.mxu0 0
    %2200 = vmatmul.mubr.bf16.gmra.mrb[0].mxu0 %v1945
    %v2201 = vpop.f32.mrb[0].mxu0
    %v2202 = vadd.f32 %v1981, %v2201
    %v2203 = vpop.f32.mrb[0].mxu0
    %v2204 = vpop.f32.mrb[0].mxu0
    %v2205 = vadd.f32 %v1981, %v2204
    %v2206 = vpop.f32.mrb[0].mxu0
    %2207 = vmatprep.mubr.bf16.mxu0 0
    %2208 = vmatmul.mubr.bf16.gmra.mrb[0].mxu0 %v1946
    %v2209 = vpop.f32.mrb[0].mxu0
    %v2210 = vadd.f32 %v1981, %v2209
    %v2211 = vpop.f32.mrb[0].mxu0
    %v2212 = vpop.f32.mrb[0].mxu0
    %v2213 = vadd.f32 %v1981, %v2212
    %v2214 = vpop.f32.mrb[0].mxu0
    %2215 = vmatprep.mubr.bf16.mxu0 0
    %2216 = vmatmul.mubr.bf16.gmra.mrb[0].mxu0 %v1947
    %v2217 = vpop.f32.mrb[0].mxu0
    %v2218 = vadd.f32 %v1981, %v2217
    %v2219 = vpop.f32.mrb[0].mxu0
    %v2220 = vpop.f32.mrb[0].mxu0
    %v2221 = vadd.f32 %v1981, %v2220
    %v2222 = vpop.f32.mrb[0].mxu0
    %2223 = vmatprep.mubr.bf16.mxu0 0
    %2224 = vmatmul.mubr.bf16.gmra.mrb[0].mxu0 %v1948
    %v2225 = vpop.f32.mrb[0].mxu0
    %v2226 = vadd.f32 %v1981, %v2225
    %v2227 = vpop.f32.mrb[0].mxu0
    %v2228 = vpop.f32.mrb[0].mxu0
    %v2229 = vadd.f32 %v1981, %v2228
    %v2230 = vpop.f32.mrb[0].mxu0
    %2231 = vmatprep.mubr.bf16.mxu0 0
    %2232 = vmatmul.mubr.bf16.gmra.mrb[0].mxu0 %v1949
    %v2233 = vpop.f32.mrb[0].mxu0
    %v2234 = vadd.f32 %v1981, %v2233
    %v2235 = vpop.f32.mrb[0].mxu0
    %v2236 = vpop.f32.mrb[0].mxu0
    %v2237 = vadd.f32 %v1981, %v2236
    %v2238 = vpop.f32.mrb[0].mxu0
    %2239 = vmatprep.mubr.bf16.mxu0 0
    %2240 = vmatmul.mubr.bf16.gmra.mrb[0].mxu0 %v1950
    %v2241 = vpop.f32.mrb[0].mxu0
    %v2242 = vadd.f32 %v1981, %v2241
    %v2243 = vpop.f32.mrb[0].mxu0
    %v2244 = vpop.f32.mrb[0].mxu0
    %v2245 = vadd.f32 %v1981, %v2244
    %v2246 = vpop.f32.mrb[0].mxu0
    %2247 = vmatprep.mubr.bf16.mxu0 0
    %2248 = vmatmul.mubr.bf16.gmra.mrb[0].mxu0 %v1951
    %v2249 = vpop.f32.mrb[0].mxu0
    %v2250 = vadd.f32 %v1981, %v2249
    %v2251 = vpop.f32.mrb[0].mxu0
    %v2252 = vpop.f32.mrb[0].mxu0
    %v2253 = vadd.f32 %v1981, %v2252
    %v2254 = vpop.f32.mrb[0].mxu0
    %2255 = vmatprep.mubr.bf16.mxu0 0
    %2256 = vmatmul.mubr.bf16.gmra.mrb[0].mxu0 %v1952
    %v2257 = vpop.f32.mrb[0].mxu0
    %v2258 = vadd.f32 %v1981, %v2257
    %v2259 = vpop.f32.mrb[0].mxu0
    %v2260 = vpop.f32.mrb[0].mxu0
    %v2261 = vadd.f32 %v1981, %v2260
    %v2262 = vpop.f32.mrb[0].mxu0
    %2263 = vmatprep.mubr.bf16.mxu0 0
    %2264 = vmatmul.mubr.bf16.gmra.mrb[0].mxu0 %v1953
    %v2265 = vpop.f32.mrb[0].mxu0
    %v2266 = vadd.f32 %v1981, %v2265
    %v2267 = vpop.f32.mrb[0].mxu0
    %v2268 = vpop.f32.mrb[0].mxu0
    %v2269 = vadd.f32 %v1981, %v2268
    %v2270 = vpop.f32.mrb[0].mxu0
    %2271 = vmatprep.mubr.bf16.mxu0 0
    %2272 = vmatmul.mubr.bf16.gmra.mrb[0].mxu0 %v1954
    %v2273 = vpop.f32.mrb[0].mxu0
    %v2274 = vadd.f32 %v1981, %v2273
    %v2275 = vpop.f32.mrb[0].mxu0
    %v2276 = vpop.f32.mrb[0].mxu0
    %v2277 = vadd.f32 %v1981, %v2276
    %v2278 = vpop.f32.mrb[0].mxu0
    %2279 = vmatprep.mubr.bf16.mxu0 0
    %2280 = vmatmul.mubr.bf16.gmra.mrb[0].mxu0 %v1955
    %v2281 = vpop.f32.mrb[0].mxu0
    %v2282 = vadd.f32 %v1981, %v2281
    %v2283 = vpop.f32.mrb[0].mxu0
    %v2284 = vpop.f32.mrb[0].mxu0
    %v2285 = vadd.f32 %v1981, %v2284
    %v2286 = vpop.f32.mrb[0].mxu0
    %2287 = vmatprep.mubr.bf16.mxu0 0
    %2288 = vmatmul.mubr.bf16.gmra.mrb[0].mxu0 %v1956
    %v2289 = vpop.f32.mrb[0].mxu0
    %v2290 = vadd.f32 %v1981, %v2289
    %v2291 = vpop.f32.mrb[0].mxu0
    %v2292 = vpop.f32.mrb[0].mxu0
    %v2293 = vadd.f32 %v1981, %v2292
    %v2294 = vpop.f32.mrb[0].mxu0
    %2295 = vmatprep.mubr.bf16.mxu0 0
    %2296 = vmatmul.mubr.bf16.gmra.mrb[0].mxu0 %v1957
    %v2297 = vpop.f32.mrb[0].mxu0
    %v2298 = vadd.f32 %v1981, %v2297
    %v2299 = vpop.f32.mrb[0].mxu0
    %v2300 = vpop.f32.mrb[0].mxu0
    %v2301 = vadd.f32 %v1981, %v2300
    %v2302 = vpop.f32.mrb[0].mxu0
    %2303 = vmatprep.mubr.bf16.mxu0 0
    %2304 = vmatmul.mubr.bf16.gmra.mrb[0].mxu0 %v1958
    %v2305 = vpop.f32.mrb[0].mxu0
    %v2306 = vadd.f32 %v1981, %v2305
    %v2307 = vpop.f32.mrb[0].mxu0
    %v2308 = vpop.f32.mrb[0].mxu0
    %v2309 = vadd.f32 %v1981, %v2308
    %v2310 = vpop.f32.mrb[0].mxu0
    %2311 = vmatprep.mubr.bf16.mxu0 0
    %2312 = vmatmul.mubr.bf16.gmra.mrb[0].mxu0 %v1959
    %v2313 = vpop.f32.mrb[0].mxu0
    %v2314 = vadd.f32 %v1981, %v2313
    %v2315 = vpop.f32.mrb[0].mxu0
    %v2316 = vpop.f32.mrb[0].mxu0
    %v2317 = vadd.f32 %v1981, %v2316
    %v2318 = vpop.f32.mrb[0].mxu0
    %2319 = vdwg.mxu0
    %v2320 = vmul.f32 %v2066, %v2066
    %v2321 = vmul.f32 %v2069, %v2069
    %v2322 = vmul.f32 %v2074, %v2074
    %v2323 = vmul.f32 %v2077, %v2077
    %v2324 = vmul.f32 %v2082, %v2082
    %v2325 = vmul.f32 %v2085, %v2085
    %v2326 = vmul.f32 %v2090, %v2090
    %v2327 = vmul.f32 %v2093, %v2093
    %v2328 = vmul.f32 %v2098, %v2098
    %v2329 = vmul.f32 %v2101, %v2101
    %v2330 = vmul.f32 %v2106, %v2106
    %v2331 = vmul.f32 %v2109, %v2109
    %v2332 = vmul.f32 %v2114, %v2114
    %v2333 = vmul.f32 %v2117, %v2117
    %v2334 = vmul.f32 %v2122, %v2122
    %v2335 = vmul.f32 %v2125, %v2125
    %v2336 = vmul.f32 %v2130, %v2130
    %v2337 = vmul.f32 %v2133, %v2133
    %v2338 = vmul.f32 %v2138, %v2138
    %v2339 = vmul.f32 %v2141, %v2141
    %v2340 = vmul.f32 %v2146, %v2146
    %v2341 = vmul.f32 %v2149, %v2149
    %v2342 = vmul.f32 %v2154, %v2154
    %v2343 = vmul.f32 %v2157, %v2157
    %v2344 = vmul.f32 %v2162, %v2162
    %v2345 = vmul.f32 %v2165, %v2165
    %v2346 = vmul.f32 %v2170, %v2170
    %v2347 = vmul.f32 %v2173, %v2173
    %v2348 = vmul.f32 %v2178, %v2178
    %v2349 = vmul.f32 %v2181, %v2181
    %v2350 = vmul.f32 %v2186, %v2186
    %v2351 = vmul.f32 %v2189, %v2189
    %v2352 = vmul.f32 %v2194, %v2194
    %v2353 = vmul.f32 %v2197, %v2197
    %v2354 = vmul.f32 %v2202, %v2202
    %v2355 = vmul.f32 %v2205, %v2205
    %v2356 = vmul.f32 %v2210, %v2210
    %v2357 = vmul.f32 %v2213, %v2213
    %v2358 = vmul.f32 %v2218, %v2218
    %v2359 = vmul.f32 %v2221, %v2221
    %v2360 = vmul.f32 %v2226, %v2226
    %v2361 = vmul.f32 %v2229, %v2229
    %v2362 = vmul.f32 %v2234, %v2234
    %v2363 = vmul.f32 %v2237, %v2237
    %v2364 = vmul.f32 %v2242, %v2242
    %v2365 = vmul.f32 %v2245, %v2245
    %v2366 = vmul.f32 %v2250, %v2250
    %v2367 = vmul.f32 %v2253, %v2253
    %v2368 = vmul.f32 %v2258, %v2258
    %v2369 = vmul.f32 %v2261, %v2261
    %v2370 = vmul.f32 %v2266, %v2266
    %v2371 = vmul.f32 %v2269, %v2269
    %v2372 = vmul.f32 %v2274, %v2274
    %v2373 = vmul.f32 %v2277, %v2277
    %v2374 = vmul.f32 %v2282, %v2282
    %v2375 = vmul.f32 %v2285, %v2285
    %v2376 = vmul.f32 %v2290, %v2290
    %v2377 = vmul.f32 %v2293, %v2293
    %v2378 = vmul.f32 %v2298, %v2298
    %v2379 = vmul.f32 %v2301, %v2301
    %v2380 = vmul.f32 %v2306, %v2306
    %v2381 = vmul.f32 %v2309, %v2309
    %v2382 = vmul.f32 %v2314, %v2314
    %v2383 = vmul.f32 %v2317, %v2317
    %v2384 = vadd.f32 %v2320, %v2321
    %v2385 = vadd.f32 %v2384, %v2322
    %v2386 = vadd.f32 %v2385, %v2323
    %v2387 = vadd.f32 %v2386, %v2324
    %v2388 = vadd.f32 %v2387, %v2325
    %v2389 = vadd.f32 %v2388, %v2326
    %v2390 = vadd.f32 %v2389, %v2327
    %v2391 = vadd.f32 %v2390, %v2328
    %v2392 = vadd.f32 %v2391, %v2329
    %v2393 = vadd.f32 %v2392, %v2330
    %v2394 = vadd.f32 %v2393, %v2331
    %v2395 = vadd.f32 %v2394, %v2332
    %v2396 = vadd.f32 %v2395, %v2333
    %v2397 = vadd.f32 %v2396, %v2334
    %v2398 = vadd.f32 %v2397, %v2335
    %v2399 = vadd.f32 %v2398, %v2336
    %v2400 = vadd.f32 %v2399, %v2337
    %v2401 = vadd.f32 %v2400, %v2338
    %v2402 = vadd.f32 %v2401, %v2339
    %v2403 = vadd.f32 %v2402, %v2340
    %v2404 = vadd.f32 %v2403, %v2341
    %v2405 = vadd.f32 %v2404, %v2342
    %v2406 = vadd.f32 %v2405, %v2343
    %v2407 = vadd.f32 %v2406, %v2344
    %v2408 = vadd.f32 %v2407, %v2345
    %v2409 = vadd.f32 %v2408, %v2346
    %v2410 = vadd.f32 %v2409, %v2347
    %v2411 = vadd.f32 %v2410, %v2348
    %v2412 = vadd.f32 %v2411, %v2349
    %v2413 = vadd.f32 %v2412, %v2350
    %v2414 = vadd.f32 %v2413, %v2351
    %v2415 = vadd.f32 %v2414, %v2352
    %v2416 = vadd.f32 %v2415, %v2353
    %v2417 = vadd.f32 %v2416, %v2354
    %v2418 = vadd.f32 %v2417, %v2355
    %v2419 = vadd.f32 %v2418, %v2356
    %v2420 = vadd.f32 %v2419, %v2357
    %v2421 = vadd.f32 %v2420, %v2358
    %v2422 = vadd.f32 %v2421, %v2359
    %v2423 = vadd.f32 %v2422, %v2360
    %v2424 = vadd.f32 %v2423, %v2361
    %v2425 = vadd.f32 %v2424, %v2362
    %v2426 = vadd.f32 %v2425, %v2363
    %v2427 = vadd.f32 %v2426, %v2364
    %v2428 = vadd.f32 %v2427, %v2365
    %v2429 = vadd.f32 %v2428, %v2366
    %v2430 = vadd.f32 %v2429, %v2367
    %v2431 = vadd.f32 %v2430, %v2368
    %v2432 = vadd.f32 %v2431, %v2369
    %v2433 = vadd.f32 %v2432, %v2370
    %v2434 = vadd.f32 %v2433, %v2371
    %v2435 = vadd.f32 %v2434, %v2372
    %v2436 = vadd.f32 %v2435, %v2373
    %v2437 = vadd.f32 %v2436, %v2374
    %v2438 = vadd.f32 %v2437, %v2375
    %v2439 = vadd.f32 %v2438, %v2376
    %v2440 = vadd.f32 %v2439, %v2377
    %v2441 = vadd.f32 %v2440, %v2378
    %v2442 = vadd.f32 %v2441, %v2379
    %v2443 = vadd.f32 %v2442, %v2380
    %v2444 = vadd.f32 %v2443, %v2381
    %v2445 = vadd.f32 %v2444, %v2382
    %v2446 = vadd.f32 %v2445, %v2383
    %v2447 = vrot.slane %v2446, 4
    %v2448 = vadd.f32 %v2446, %v2447
    %v2449 = vrot.slane %v2448, 2
    %v2450 = vadd.f32 %v2448, %v2449
    %v2451 = vrot.slane %v2450, 1
    %v2452 = vadd.f32 %v2450, %v2451
    %v2453 = vmax.f32 %v2452, 1e-24
    %v2454 = vrsqrt.pop %v2453
    %v2455 = vmul.f32 %v2066, %v2454
    %v2456 = vmul.f32 %v2069, %v2454
    %v2457 = vmul.f32 %v2074, %v2454
    %v2458 = vmul.f32 %v2077, %v2454
    %v2459 = vmul.f32 %v2082, %v2454
    %v2460 = vmul.f32 %v2085, %v2454
    %v2461 = vmul.f32 %v2090, %v2454
    %v2462 = vmul.f32 %v2093, %v2454
    %v2463 = vmul.f32 %v2098, %v2454
    %v2464 = vmul.f32 %v2101, %v2454
    %v2465 = vmul.f32 %v2106, %v2454
    %v2466 = vmul.f32 %v2109, %v2454
    %v2467 = vmul.f32 %v2114, %v2454
    %v2468 = vmul.f32 %v2117, %v2454
    %v2469 = vmul.f32 %v2122, %v2454
    %v2470 = vmul.f32 %v2125, %v2454
    %v2471 = vmul.f32 %v2130, %v2454
    %v2472 = vmul.f32 %v2133, %v2454
    %v2473 = vmul.f32 %v2138, %v2454
    %v2474 = vmul.f32 %v2141, %v2454
    %v2475 = vmul.f32 %v2146, %v2454
    %v2476 = vmul.f32 %v2149, %v2454
    %v2477 = vmul.f32 %v2154, %v2454
    %v2478 = vmul.f32 %v2157, %v2454
    %v2479 = vmul.f32 %v2162, %v2454
    %v2480 = vmul.f32 %v2165, %v2454
    %v2481 = vmul.f32 %v2170, %v2454
    %v2482 = vmul.f32 %v2173, %v2454
    %v2483 = vmul.f32 %v2178, %v2454
    %v2484 = vmul.f32 %v2181, %v2454
    %v2485 = vmul.f32 %v2186, %v2454
    %v2486 = vmul.f32 %v2189, %v2454
    %v2487 = vmul.f32 %v2194, %v2454
    %v2488 = vmul.f32 %v2197, %v2454
    %v2489 = vmul.f32 %v2202, %v2454
    %v2490 = vmul.f32 %v2205, %v2454
    %v2491 = vmul.f32 %v2210, %v2454
    %v2492 = vmul.f32 %v2213, %v2454
    %v2493 = vmul.f32 %v2218, %v2454
    %v2494 = vmul.f32 %v2221, %v2454
    %v2495 = vmul.f32 %v2226, %v2454
    %v2496 = vmul.f32 %v2229, %v2454
    %v2497 = vmul.f32 %v2234, %v2454
    %v2498 = vmul.f32 %v2237, %v2454
    %v2499 = vmul.f32 %v2242, %v2454
    %v2500 = vmul.f32 %v2245, %v2454
    %v2501 = vmul.f32 %v2250, %v2454
    %v2502 = vmul.f32 %v2253, %v2454
    %v2503 = vmul.f32 %v2258, %v2454
    %v2504 = vmul.f32 %v2261, %v2454
    %v2505 = vmul.f32 %v2266, %v2454
    %v2506 = vmul.f32 %v2269, %v2454
    %v2507 = vmul.f32 %v2274, %v2454
    %v2508 = vmul.f32 %v2277, %v2454
    %v2509 = vmul.f32 %v2282, %v2454
    %v2510 = vmul.f32 %v2285, %v2454
    %v2511 = vmul.f32 %v2290, %v2454
    %v2512 = vmul.f32 %v2293, %v2454
    %v2513 = vmul.f32 %v2298, %v2454
    %v2514 = vmul.f32 %v2301, %v2454
    %v2515 = vmul.f32 %v2306, %v2454
    %v2516 = vmul.f32 %v2309, %v2454
    %v2517 = vmul.f32 %v2314, %v2454
    %v2518 = vmul.f32 %v2317, %v2454
    %2519 = vst [vmem:[#allocation2] sm:$0xff] %v2455
    %2520 = vst [vmem:[#allocation2 + $0x8] sm:$0xff] %v2456
    %2521 = vst [vmem:[#allocation2 + $0x10] sm:$0xff] %v2457
    %2522 = vst [vmem:[#allocation2 + $0x18] sm:$0xff] %v2458
    %2523 = vst [vmem:[#allocation2 + $0x20] sm:$0xff] %v2459
    %2524 = vst [vmem:[#allocation2 + $0x28] sm:$0xff] %v2460
    %2525 = vst [vmem:[#allocation2 + $0x30] sm:$0xff] %v2461
    %2526 = vst [vmem:[#allocation2 + $0x38] sm:$0xff] %v2462
    %2527 = vst [vmem:[#allocation2 + $0x40] sm:$0xff] %v2463
    %2528 = vst [vmem:[#allocation2 + $0x48] sm:$0xff] %v2464
    %2529 = vst [vmem:[#allocation2 + $0x50] sm:$0xff] %v2465
    %2530 = vst [vmem:[#allocation2 + $0x58] sm:$0xff] %v2466
    %2531 = vst [vmem:[#allocation2 + $0x60] sm:$0xff] %v2467
    %2532 = vst [vmem:[#allocation2 + $0x68] sm:$0xff] %v2468
    %2533 = vst [vmem:[#allocation2 + $0x70] sm:$0xff] %v2469
    %2534 = vst [vmem:[#allocation2 + $0x78] sm:$0xff] %v2470
    %2535 = vst [vmem:[#allocation2 + $0x80] sm:$0xff] %v2471
    %2536 = vst [vmem:[#allocation2 + $0x88] sm:$0xff] %v2472
    %2537 = vst [vmem:[#allocation2 + $0x90] sm:$0xff] %v2473
    %2538 = vst [vmem:[#allocation2 + $0x98] sm:$0xff] %v2474
    %2539 = vst [vmem:[#allocation2 + $0xa0] sm:$0xff] %v2475
    %2540 = vst [vmem:[#allocation2 + $0xa8] sm:$0xff] %v2476
    %2541 = vst [vmem:[#allocation2 + $0xb0] sm:$0xff] %v2477
    %2542 = vst [vmem:[#allocation2 + $0xb8] sm:$0xff] %v2478
    %2543 = vst [vmem:[#allocation2 + $0xc0] sm:$0xff] %v2479
    %2544 = vst [vmem:[#allocation2 + $0xc8] sm:$0xff] %v2480
    %2545 = vst [vmem:[#allocation2 + $0xd0] sm:$0xff] %v2481
    %2546 = vst [vmem:[#allocation2 + $0xd8] sm:$0xff] %v2482
    %2547 = vst [vmem:[#allocation2 + $0xe0] sm:$0xff] %v2483
    %2548 = vst [vmem:[#allocation2 + $0xe8] sm:$0xff] %v2484
    %2549 = vst [vmem:[#allocation2 + $0xf0] sm:$0xff] %v2485
    %2550 = vst [vmem:[#allocation2 + $0xf8] sm:$0xff] %v2486
    %2551 = vst [vmem:[#allocation2 + $0x100] sm:$0xff] %v2487
    %2552 = vst [vmem:[#allocation2 + $0x108] sm:$0xff] %v2488
    %2553 = vst [vmem:[#allocation2 + $0x110] sm:$0xff] %v2489
    %2554 = vst [vmem:[#allocation2 + $0x118] sm:$0xff] %v2490
    %2555 = vst [vmem:[#allocation2 + $0x120] sm:$0xff] %v2491
    %2556 = vst [vmem:[#allocation2 + $0x128] sm:$0xff] %v2492
    %2557 = vst [vmem:[#allocation2 + $0x130] sm:$0xff] %v2493
    %2558 = vst [vmem:[#allocation2 + $0x138] sm:$0xff] %v2494
    %2559 = vst [vmem:[#allocation2 + $0x140] sm:$0xff] %v2495
    %2560 = vst [vmem:[#allocation2 + $0x148] sm:$0xff] %v2496
    %2561 = vst [vmem:[#allocation2 + $0x150] sm:$0xff] %v2497
    %2562 = vst [vmem:[#allocation2 + $0x158] sm:$0xff] %v2498
    %2563 = vst [vmem:[#allocation2 + $0x160] sm:$0xff] %v2499
    %2564 = vst [vmem:[#allocation2 + $0x168] sm:$0xff] %v2500
    %2565 = vst [vmem:[#allocation2 + $0x170] sm:$0xff] %v2501
    %2566 = vst [vmem:[#allocation2 + $0x178] sm:$0xff] %v2502
    %2567 = vst [vmem:[#allocation2 + $0x180] sm:$0xff] %v2503
    %2568 = vst [vmem:[#allocation2 + $0x188] sm:$0xff] %v2504
    %2569 = vst [vmem:[#allocation2 + $0x190] sm:$0xff] %v2505
    %2570 = vst [vmem:[#allocation2 + $0x198] sm:$0xff] %v2506
    %2571 = vst [vmem:[#allocation2 + $0x1a0] sm:$0xff] %v2507
    %2572 = vst [vmem:[#allocation2 + $0x1a8] sm:$0xff] %v2508
    %2573 = vst [vmem:[#allocation2 + $0x1b0] sm:$0xff] %v2509
    %2574 = vst [vmem:[#allocation2 + $0x1b8] sm:$0xff] %v2510
    %2575 = vst [vmem:[#allocation2 + $0x1c0] sm:$0xff] %v2511
    %2576 = vst [vmem:[#allocation2 + $0x1c8] sm:$0xff] %v2512
    %2577 = vst [vmem:[#allocation2 + $0x1d0] sm:$0xff] %v2513
    %2578 = vst [vmem:[#allocation2 + $0x1d8] sm:$0xff] %v2514
    %2579 = vst [vmem:[#allocation2 + $0x1e0] sm:$0xff] %v2515
    %2580 = vst [vmem:[#allocation2 + $0x1e8] sm:$0xff] %v2516
    %2581 = vst [vmem:[#allocation2 + $0x1f0] sm:$0xff] %v2517
    %2582 = vst [vmem:[#allocation2 + $0x1f8] sm:$0xff] %v2518
    // Predicated region
    $region46: #{clcp_forward.1} parent=1 // pred_check
      _
    $region47: #{clcp_forward.1} parent=1 // pred_check_branch
      %2584 = sbr.rel (0) target = $region49
    $region48: #{clcp_forward.1} parent=1 // pred_region
      %s2586 = ssub.s32 8192, 8192
      %2587 = vsyncadd [#allocation3], %s2586
      %s2588 = sshll.u32 [#allocation2], 4
      %s2589 = int_to_ptr.vmem [resolvable:$true] %s2588
      %2594 = dma.vmem_to_hbm [thread:$0]  %s2589, 8192, %s11, [#allocation3], 128, 128, 8
    $region49: #{clcp_forward.1} parent=1 // pred_fallthru
      _
    // Predicated region
    $region50: #{clcp_forward.1} parent=1 // pred_check
      _
    $region51: #{clcp_forward.1} parent=1 // pred_check_branch
      %2596 = sbr.rel (0) target = $region53
    $region52: #{clcp_forward.1} parent=1 // pred_region
      %2597 = dma.done [#allocation3], 8192
    $region53: #{clcp_forward.1} parent=1 // pred_fallthru
      _
    %2598 = vsyncpa [#allocation3], 1

</llo_original>
